<compile_context>
chip_gen: v7x
topology: tpu7x:2x2x1
jax: 0.10.0
libtpu: 0.0.40
codegen_flags: <defaults>
</compile_context>

<pallas_src>
import functools

import jax
import jax.numpy as jnp
import numpy as np
from jax.experimental import pallas as pl
from jax.experimental.pallas import tpu as pltpu


# ---------------------------------------------------------------------------
# Pallas kernel: one block of WB windows per grid step.
# ---------------------------------------------------------------------------
def _window_attn_kernel(x_ref, wqkv_ref, bqkv_ref, wp_ref, bp_ref,
                        rb_ref, mask_ref, o_ref,
                        *, num_heads, head_dim, wb, has_mask):
    N = x_ref.shape[1]
    C = num_heads * head_dim

    # ---- fused QKV projection (bf16 operands, f32 accumulate) -------------
    x = x_ref[...].reshape(wb * N, C)                         # (WB*N, C) bf16
    qkv = jnp.dot(x, wqkv_ref[...],
                  preferred_element_type=jnp.float32)         # (WB*N, 3C) f32
    qkv = qkv + bqkv_ref[...]                                 # (1, 3C) broadcast

    # Per-window additive mask (shared across heads), built once per block.
    if has_mask:
        nw = mask_ref.shape[0]
        if wb == nw:
            mask_blk = mask_ref[...]                          # (WB, N, N)
        else:
            mask_blk = jnp.tile(mask_ref[...], (wb // nw, 1, 1))

    outs = []
    for h in range(num_heads):                                # static head loop
        lo = h * head_dim
        qh = qkv[:, lo:lo + head_dim].reshape(wb, N, head_dim).astype(jnp.bfloat16)
        kh = qkv[:, C + lo:C + lo + head_dim].reshape(wb, N, head_dim).astype(jnp.bfloat16)
        vh = qkv[:, 2 * C + lo:2 * C + lo + head_dim].reshape(wb, N, head_dim).astype(jnp.bfloat16)

        # window-batched q @ k^T  -> (WB, N, N), f32
        attn = jax.lax.dot_general(qh, kh, (((2,), (2,)), ((0,), (0,))),
                                   preferred_element_type=jnp.float32)

        attn = attn + rb_ref[h][None, :, :]                   # relative pos bias
        if has_mask:
            attn = attn + mask_blk                            # shifted-window mask

        # softmax over keys, in f32
        attn = attn - jnp.max(attn, axis=-1, keepdims=True)
        p = jnp.exp(attn)
        p = p * pl.reciprocal(jnp.sum(p, axis=-1, keepdims=True), approx=True)

        # TODO(synk): attn_drop / proj_drop are identity at p=0.0 (and in eval),
        # so dropout is intentionally a no-op here.

        # window-batched attn @ v  -> (WB, N, hd)
        outs.append(jax.lax.dot_general(p.astype(jnp.bfloat16), vh,
                                        (((2,), (1,)), ((0,), (0,))),
                                        preferred_element_type=jnp.float32))

    out = jnp.concatenate(outs, axis=-1)                      # (WB, N, C)
    out = out.reshape(wb * N, C).astype(jnp.bfloat16)

    # output projection
    y = jnp.dot(out, wp_ref[...], preferred_element_type=jnp.float32)
    y = y + bp_ref[...]                                       # (1, C) broadcast
    o_ref[...] = y.reshape(wb, N, C).astype(o_ref.dtype)


# ---------------------------------------------------------------------------
# Window-block (WB) selection.
#   * WB must divide B_ ; when a mask is present it must also be a multiple of
#     nW so it can be tiled (or used directly) inside the kernel.
#   * Prefer a grid length >= 2 (megacore / v7x's two TensorCores).
#   * target_rows ~ 256 keeps VMEM usage tiny at these sizes.
# ---------------------------------------------------------------------------
def _choose_window_block(B_, N, nW, target_rows=256):
    step = nW if nW is not None else 1
    candidates = [wb for wb in range(step, B_ + 1, step) if B_ % wb == 0]
    if not candidates:
        return B_
    target = max(step, max(1, target_rows // max(N, 1)))
    multi = [wb for wb in candidates if B_ // wb >= 2]
    pool = multi if multi else candidates
    fit = [wb for wb in pool if wb <= target]
    return max(fit) if fit else min(pool)


# ---------------------------------------------------------------------------
# Wrapper: parameter fusion, bias gather, pallas_call launch.
# ---------------------------------------------------------------------------
def window_attention_pallas(x, params, window_size, num_heads, mask=None):
    B_, N, C = x.shape
    head_dim = C // num_heads
    scale = head_dim ** (-0.5)

    # Fused QKV weight/bias, with the softmax scale folded into the q columns.
    wqkv = jnp.concatenate(
        [params["wq"] * scale, params["wk"], params["wv"]], axis=1)   # (C, 3C)
    bqkv = jnp.concatenate(
        [params["bq"] * scale, params["bk"], params["bv"]], axis=1)   # (1, 3C)
    wp, bp = params["wp"], params["bp"]                               # (C, C), (1, C)

    # Relative position bias gather (plain-JAX glue): (nH, N, N), shared by all
    # windows -- passed once, never replicated per window.
    rel_bias = params["rpb_table"][params["rp_index"].reshape(-1)]
    rel_bias = rel_bias.reshape(N, N, num_heads).transpose(2, 0, 1)
    rel_bias = rel_bias.astype(jnp.float32)

    if mask is not None:
        nW = mask.shape[0]
        assert B_ % nW == 0
        mask_in = mask.astype(jnp.float32)                            # (nW, N, N)
        has_mask = True
    else:
        nW = None
        mask_in = jnp.zeros((1, N, N), jnp.float32)                   # dummy, unread
        has_mask = False
    n_mask = mask_in.shape[0]

    wb = _choose_window_block(B_, N, nW)
    grid = (B_ // wb,)

    kernel = functools.partial(_window_attn_kernel,
                               num_heads=num_heads, head_dim=head_dim,
                               wb=wb, has_mask=has_mask)

    # bf16 matmul operands (MXU native rate); biases / additive terms stay f32.
    x_bf = x.astype(jnp.bfloat16)
    wqkv_bf = wqkv.astype(jnp.bfloat16)
    wp_bf = wp.astype(jnp.bfloat16)
    bqkv_f = bqkv.astype(jnp.float32)
    bp_f = bp.astype(jnp.float32)

    grid_spec = pltpu.PrefetchScalarGridSpec(
        num_scalar_prefetch=0,
        grid=grid,
        in_specs=[
            pl.BlockSpec((wb, N, C), lambda b: (b, 0, 0)),            # x block
            pl.BlockSpec((C, 3 * C), lambda b: (0, 0)),               # fused wqkv
            pl.BlockSpec((1, 3 * C), lambda b: (0, 0)),               # fused bqkv
            pl.BlockSpec((C, C), lambda b: (0, 0)),                   # wp
            pl.BlockSpec((1, C), lambda b: (0, 0)),                   # bp
            pl.BlockSpec((num_heads, N, N), lambda b: (0, 0, 0)),     # rel bias
            pl.BlockSpec((n_mask, N, N), lambda b: (0, 0, 0)),        # mask
        ],
        out_specs=pl.BlockSpec((wb, N, C), lambda b: (b, 0, 0)),
    )

    return pl.pallas_call(
        kernel,
        out_shape=jax.ShapeDtypeStruct((B_, N, C), jnp.float32),
        grid_spec=grid_spec,
        compiler_params=pltpu.CompilerParams(
            dimension_semantics=("parallel",)),
    )(x_bf, wqkv_bf, bqkv_f, wp_bf, bp_f, rel_bias, mask_in)


# ---------------------------------------------------------------------------
# Pure-JAX reference (mirrors the PyTorch forward) for a correctness check.
# ---------------------------------------------------------------------------
def window_attention_ref(x, params, window_size, num_heads, mask=None):
    B_, N, C = x.shape
    head_dim = C // num_heads
    scale = head_dim ** (-0.5)

    wqkv = jnp.concatenate([params["wq"], params["wk"], params["wv"]], axis=1)
    bqkv = jnp.concatenate([params["bq"], params["bk"], params["bv"]], axis=1)[0]

    qkv = x @ wqkv + bqkv                                          # (B_, N, 3C)
    qkv = qkv.reshape(B_, N, 3, num_heads, head_dim).transpose(2, 0, 3, 1, 4)
    q, k, v = qkv[0], qkv[1], qkv[2]                               # (B_, nH, N, hd)
    q = q * scale
    attn = jnp.einsum("bhnd,bhmd->bhnm", q, k)

    rel_bias = params["rpb_table"][params["rp_index"].reshape(-1)]
    rel_bias = rel_bias.reshape(N, N, num_heads).transpose(2, 0, 1)
    attn = attn + rel_bias[None]

    if mask is not None:
        nW = mask.shape[0]
        attn = attn.reshape(B_ // nW, nW, num_heads, N, N) + mask[None, :, None]
        attn = attn.reshape(B_, num_heads, N, N)
    attn = jax.nn.softmax(attn, axis=-1)

    out = jnp.einsum("bhnm,bhmd->bhnd", attn, v)
    out = out.transpose(0, 2, 1, 3).reshape(B_, N, C)
    return out @ params["wp"] + params["bp"][0]


# ---------------------------------------------------------------------------
# Deterministic parameter / buffer construction.
# ---------------------------------------------------------------------------
def make_params(key, dim, window_size, num_heads):
    Wh, Ww = window_size
    C = dim
    ks = jax.random.split(key, 8)

    def lin_w(k, cin, cout):
        bound = 1.0 / np.sqrt(cin)
        return jax.random.uniform(k, (cin, cout), jnp.float32, -bound, bound)

    def lin_b(k, cin, cout):
        bound = 1.0 / np.sqrt(cin)
        return jax.random.uniform(k, (1, cout), jnp.float32, -bound, bound)

    params = {
        "wq": lin_w(ks[0], C, C), "bq": lin_b(ks[1], C, C),
        "wk": lin_w(ks[2], C, C), "bk": lin_b(ks[3], C, C),
        "wv": lin_w(ks[4], C, C), "bv": lin_b(ks[5], C, C),
        "wp": lin_w(ks[6], C, C), "bp": lin_b(ks[7], C, C),
    }

    # relative position bias table ~ trunc_normal(std=0.02)
    tbl_key = jax.random.fold_in(key, 123)
    tbl = 0.02 * jax.random.truncated_normal(
        tbl_key, -2.0, 2.0, ((2 * Wh - 1) * (2 * Ww - 1), num_heads), jnp.float32)
    params["rpb_table"] = tbl

    # relative position index (same construction as the PyTorch module, numpy)
    coords_h = np.arange(Wh)
    coords_w = np.arange(Ww)
    coords = np.stack(np.meshgrid(coords_h, coords_w, indexing="ij"))   # (2, Wh, Ww)
    coords_flat = coords.reshape(2, -1)                                 # (2, N)
    rel = coords_flat[:, :, None] - coords_flat[:, None, :]             # (2, N, N)
    rel = rel.transpose(1, 2, 0)                                        # (N, N, 2)
    rel[:, :, 0] += Wh - 1
    rel[:, :, 1] += Ww - 1
    rel[:, :, 0] *= 2 * Ww - 1
    params["rp_index"] = jnp.asarray(rel.sum(-1), jnp.int32)            # (N, N)
    return params


if __name__ == "__main__":
    key = jax.random.PRNGKey(0)

    dim = 32
    num_heads = 4
    window_size = (4, 4)
    N = window_size[0] * window_size[1]        # 16 tokens per window
    nW = 4                                     # windows per image
    B_ = 2 * nW                                # batch 2 -> 8 windows total

    kx, km, kp = jax.random.split(key, 3)
    x = jax.random.normal(kx, (B_, N, dim), jnp.float32)

    # Swin-style shifted-window mask: entries are 0 or -100
    mask_bits = jax.random.bernoulli(km, 0.25, (nW, N, N))
    mask = jnp.where(mask_bits, jnp.float32(-100.0), jnp.float32(0.0))

    params = make_params(kp, dim, window_size, num_heads)

    # run with mask and without mask, check against pure-JAX f32 reference
    out_mask = window_attention_pallas(x, params, window_size, num_heads, mask=mask)
    out_mask = jax.block_until_ready(out_mask)
    ref_mask = window_attention_ref(x, params, window_size, num_heads, mask=mask)

    out_nom = window_attention_pallas(x, params, window_size, num_heads, mask=None)
    out_nom = jax.block_until_ready(out_nom)
    ref_nom = window_attention_ref(x, params, window_size, num_heads, mask=None)

    assert out_mask.shape == (B_, N, dim)
    # bf16 MXU operands + approx reciprocal => ~1e-2 level agreement vs f32 ref.
    np.testing.assert_allclose(np.asarray(out_mask), np.asarray(ref_mask),
                               rtol=3e-2, atol=3e-2)
    np.testing.assert_allclose(np.asarray(out_nom), np.asarray(ref_nom),
                               rtol=3e-2, atol=3e-2)

    print("KERNEL_OK")
</pallas_src>

<mosaic_0001>
module attributes {stable_mosaic.version = 11 : i64} {
  func.func @_window_attn_kernel(%arg0: i32, %arg1: memref<4x16x32xbf16, #tpu.memory_space<vmem>>, %arg2: memref<32x96xbf16, #tpu.memory_space<vmem>>, %arg3: memref<1x96xf32, #tpu.memory_space<vmem>>, %arg4: memref<32x32xbf16, #tpu.memory_space<vmem>>, %arg5: memref<1x32xf32, #tpu.memory_space<vmem>>, %arg6: memref<4x16x16xf32, #tpu.memory_space<vmem>>, %arg7: memref<4x16x16xf32, #tpu.memory_space<vmem>>, %arg8: memref<4x16x32xf32, #tpu.memory_space<vmem>>) attributes {dimension_semantics = [#tpu.dimension_semantics<parallel>], iteration_bounds = array<i64: 2>, scalar_prefetch = 0 : i64, scratch_operands = 0 : i64, tpu.core_type = #tpu.core_type<tc>, window_params = [{transform_indices = @transform_0, window_bounds = array<i64: 4, 16, 32>}, {pipeline_mode = #tpu.pipeline_mode<synchronous>, transform_indices = @transform_1, window_bounds = array<i64: 32, 96>}, {pipeline_mode = #tpu.pipeline_mode<synchronous>, transform_indices = @transform_2, window_bounds = array<i64: 1, 96>}, {pipeline_mode = #tpu.pipeline_mode<synchronous>, transform_indices = @transform_3, window_bounds = array<i64: 32, 32>}, {pipeline_mode = #tpu.pipeline_mode<synchronous>, transform_indices = @transform_4, window_bounds = array<i64: 1, 32>}, {pipeline_mode = #tpu.pipeline_mode<synchronous>, transform_indices = @transform_5, window_bounds = array<i64: 4, 16, 16>}, {pipeline_mode = #tpu.pipeline_mode<synchronous>, transform_indices = @transform_6, window_bounds = array<i64: 4, 16, 16>}, {transform_indices = @transform_7, window_bounds = array<i64: 4, 16, 32>}]} {
    %c0 = arith.constant 0 : index
    %c0_0 = arith.constant 0 : index
    %c0_1 = arith.constant 0 : index
    %0 = vector.load %arg1[%c0, %c0_0, %c0_1] : memref<4x16x32xbf16, #tpu.memory_space<vmem>>, vector<4x16x32xbf16>
    %1 = vector.shape_cast %0 : vector<4x16x32xbf16> to vector<64x32xbf16>
    %c0_2 = arith.constant 0 : index
    %c0_3 = arith.constant 0 : index
    %2 = vector.load %arg2[%c0_2, %c0_3] : memref<32x96xbf16, #tpu.memory_space<vmem>>, vector<32x96xbf16>
    %cst = arith.constant dense<0.000000e+00> : vector<64x96xf32>
    %3 = tpu.matmul %1, %2, %cst {dimension_numbers = #tpu.dot_dimension_numbers<[1], [0], [0], [1], [0, 0, 1, 1], [], []>} : vector<64x32xbf16>, vector<32x96xbf16>, vector<64x96xf32> -> vector<64x96xf32>
    %c0_4 = arith.constant 0 : index
    %c0_5 = arith.constant 0 : index
    %4 = vector.load %arg3[%c0_4, %c0_5] : memref<1x96xf32, #tpu.memory_space<vmem>>, vector<1x96xf32>
    %5 = vector.broadcast %4 : vector<1x96xf32> to vector<64x96xf32>
    %6 = arith.addf %3, %5 : vector<64x96xf32>
    %c0_6 = arith.constant 0 : index
    %c0_7 = arith.constant 0 : index
    %c0_8 = arith.constant 0 : index
    %7 = vector.load %arg7[%c0_6, %c0_7, %c0_8] : memref<4x16x16xf32, #tpu.memory_space<vmem>>, vector<4x16x16xf32>
    %8 = vector.extract_strided_slice %6 {offsets = [0, 0], sizes = [64, 8], strides = [1, 1]} : vector<64x96xf32> to vector<64x8xf32>
    %9 = vector.shape_cast %8 : vector<64x8xf32> to vector<4x16x8xf32>
    %10 = arith.truncf %9 : vector<4x16x8xf32> to vector<4x16x8xbf16>
    %11 = vector.extract_strided_slice %6 {offsets = [0, 32], sizes = [64, 8], strides = [1, 1]} : vector<64x96xf32> to vector<64x8xf32>
    %12 = vector.shape_cast %11 : vector<64x8xf32> to vector<4x16x8xf32>
    %13 = arith.truncf %12 : vector<4x16x8xf32> to vector<4x16x8xbf16>
    %14 = vector.extract_strided_slice %6 {offsets = [0, 64], sizes = [64, 8], strides = [1, 1]} : vector<64x96xf32> to vector<64x8xf32>
    %15 = vector.shape_cast %14 : vector<64x8xf32> to vector<4x16x8xf32>
    %16 = arith.truncf %15 : vector<4x16x8xf32> to vector<4x16x8xbf16>
    %cst_9 = arith.constant dense<0.000000e+00> : vector<4x16x16xf32>
    %17 = tpu.matmul %10, %13, %cst_9 {dimension_numbers = #tpu.dot_dimension_numbers<[2], [2], [1], [1], [0, 0, 0, 1, 1, 1], [0], [0]>} : vector<4x16x8xbf16>, vector<4x16x8xbf16>, vector<4x16x16xf32> -> vector<4x16x16xf32>
    %c0_10 = arith.constant 0 : index
    %c0_11 = arith.constant 0 : index
    %c0_12 = arith.constant 0 : index
    %18 = vector.load %arg6[%c0_10, %c0_11, %c0_12] : memref<4x16x16xf32, #tpu.memory_space<vmem>>, vector<1x16x16xf32>
    %19 = vector.shape_cast %18 : vector<1x16x16xf32> to vector<16x16xf32>
    %20 = vector.shape_cast %19 : vector<16x16xf32> to vector<1x16x16xf32>
    %21 = vector.broadcast %20 : vector<1x16x16xf32> to vector<4x16x16xf32>
    %22 = arith.addf %17, %21 : vector<4x16x16xf32>
    %23 = arith.addf %22, %7 : vector<4x16x16xf32>
    %cst_13 = arith.constant dense<0xFF800000> : vector<4x16xf32>
    %24 = vector.multi_reduction <maximumf>, %23, %cst_13 [2] : vector<4x16x16xf32> to vector<4x16xf32>
    %25 = vector.shape_cast %24 : vector<4x16xf32> to vector<4x16x1xf32>
    %26 = vector.broadcast %25 : vector<4x16x1xf32> to vector<4x16x16xf32>
    %27 = arith.subf %23, %26 : vector<4x16x16xf32>
    %28 = math.exp %27 : vector<4x16x16xf32>
    %cst_14 = arith.constant dense<0.000000e+00> : vector<4x16xf32>
    %29 = vector.multi_reduction <add>, %28, %cst_14 [2] : vector<4x16x16xf32> to vector<4x16xf32>
    %30 = vector.shape_cast %29 : vector<4x16xf32> to vector<4x16x1xf32>
    %31 = tpu.reciprocal %30 {approx = true} : vector<4x16x1xf32> -> vector<4x16x1xf32>
    %32 = vector.broadcast %31 : vector<4x16x1xf32> to vector<4x16x16xf32>
    %33 = arith.mulf %28, %32 : vector<4x16x16xf32>
    %34 = arith.truncf %33 : vector<4x16x16xf32> to vector<4x16x16xbf16>
    %cst_15 = arith.constant dense<0.000000e+00> : vector<4x16x8xf32>
    %35 = tpu.matmul %34, %16, %cst_15 {dimension_numbers = #tpu.dot_dimension_numbers<[2], [1], [1], [2], [0, 0, 0, 1, 1, 2], [0], [0]>} : vector<4x16x16xbf16>, vector<4x16x8xbf16>, vector<4x16x8xf32> -> vector<4x16x8xf32>
    %36 = vector.extract_strided_slice %6 {offsets = [0, 8], sizes = [64, 8], strides = [1, 1]} : vector<64x96xf32> to vector<64x8xf32>
    %37 = vector.shape_cast %36 : vector<64x8xf32> to vector<4x16x8xf32>
    %38 = arith.truncf %37 : vector<4x16x8xf32> to vector<4x16x8xbf16>
    %39 = vector.extract_strided_slice %6 {offsets = [0, 40], sizes = [64, 8], strides = [1, 1]} : vector<64x96xf32> to vector<64x8xf32>
    %40 = vector.shape_cast %39 : vector<64x8xf32> to vector<4x16x8xf32>
    %41 = arith.truncf %40 : vector<4x16x8xf32> to vector<4x16x8xbf16>
    %42 = vector.extract_strided_slice %6 {offsets = [0, 72], sizes = [64, 8], strides = [1, 1]} : vector<64x96xf32> to vector<64x8xf32>
    %43 = vector.shape_cast %42 : vector<64x8xf32> to vector<4x16x8xf32>
    %44 = arith.truncf %43 : vector<4x16x8xf32> to vector<4x16x8xbf16>
    %cst_16 = arith.constant dense<0.000000e+00> : vector<4x16x16xf32>
    %45 = tpu.matmul %38, %41, %cst_16 {dimension_numbers = #tpu.dot_dimension_numbers<[2], [2], [1], [1], [0, 0, 0, 1, 1, 1], [0], [0]>} : vector<4x16x8xbf16>, vector<4x16x8xbf16>, vector<4x16x16xf32> -> vector<4x16x16xf32>
    %c1 = arith.constant 1 : index
    %c0_17 = arith.constant 0 : index
    %c0_18 = arith.constant 0 : index
    %46 = vector.load %arg6[%c1, %c0_17, %c0_18] : memref<4x16x16xf32, #tpu.memory_space<vmem>>, vector<1x16x16xf32>
    %47 = vector.shape_cast %46 : vector<1x16x16xf32> to vector<16x16xf32>
    %48 = vector.shape_cast %47 : vector<16x16xf32> to vector<1x16x16xf32>
    %49 = vector.broadcast %48 : vector<1x16x16xf32> to vector<4x16x16xf32>
    %50 = arith.addf %45, %49 : vector<4x16x16xf32>
    %51 = arith.addf %50, %7 : vector<4x16x16xf32>
    %cst_19 = arith.constant dense<0xFF800000> : vector<4x16xf32>
    %52 = vector.multi_reduction <maximumf>, %51, %cst_19 [2] : vector<4x16x16xf32> to vector<4x16xf32>
    %53 = vector.shape_cast %52 : vector<4x16xf32> to vector<4x16x1xf32>
    %54 = vector.broadcast %53 : vector<4x16x1xf32> to vector<4x16x16xf32>
    %55 = arith.subf %51, %54 : vector<4x16x16xf32>
    %56 = math.exp %55 : vector<4x16x16xf32>
    %cst_20 = arith.constant dense<0.000000e+00> : vector<4x16xf32>
    %57 = vector.multi_reduction <add>, %56, %cst_20 [2] : vector<4x16x16xf32> to vector<4x16xf32>
    %58 = vector.shape_cast %57 : vector<4x16xf32> to vector<4x16x1xf32>
    %59 = tpu.reciprocal %58 {approx = true} : vector<4x16x1xf32> -> vector<4x16x1xf32>
    %60 = vector.broadcast %59 : vector<4x16x1xf32> to vector<4x16x16xf32>
    %61 = arith.mulf %56, %60 : vector<4x16x16xf32>
    %62 = arith.truncf %61 : vector<4x16x16xf32> to vector<4x16x16xbf16>
    %cst_21 = arith.constant dense<0.000000e+00> : vector<4x16x8xf32>
    %63 = tpu.matmul %62, %44, %cst_21 {dimension_numbers = #tpu.dot_dimension_numbers<[2], [1], [1], [2], [0, 0, 0, 1, 1, 2], [0], [0]>} : vector<4x16x16xbf16>, vector<4x16x8xbf16>, vector<4x16x8xf32> -> vector<4x16x8xf32>
    %64 = vector.extract_strided_slice %6 {offsets = [0, 16], sizes = [64, 8], strides = [1, 1]} : vector<64x96xf32> to vector<64x8xf32>
    %65 = vector.shape_cast %64 : vector<64x8xf32> to vector<4x16x8xf32>
    %66 = arith.truncf %65 : vector<4x16x8xf32> to vector<4x16x8xbf16>
    %67 = vector.extract_strided_slice %6 {offsets = [0, 48], sizes = [64, 8], strides = [1, 1]} : vector<64x96xf32> to vector<64x8xf32>
    %68 = vector.shape_cast %67 : vector<64x8xf32> to vector<4x16x8xf32>
    %69 = arith.truncf %68 : vector<4x16x8xf32> to vector<4x16x8xbf16>
    %70 = vector.extract_strided_slice %6 {offsets = [0, 80], sizes = [64, 8], strides = [1, 1]} : vector<64x96xf32> to vector<64x8xf32>
    %71 = vector.shape_cast %70 : vector<64x8xf32> to vector<4x16x8xf32>
    %72 = arith.truncf %71 : vector<4x16x8xf32> to vector<4x16x8xbf16>
    %cst_22 = arith.constant dense<0.000000e+00> : vector<4x16x16xf32>
    %73 = tpu.matmul %66, %69, %cst_22 {dimension_numbers = #tpu.dot_dimension_numbers<[2], [2], [1], [1], [0, 0, 0, 1, 1, 1], [0], [0]>} : vector<4x16x8xbf16>, vector<4x16x8xbf16>, vector<4x16x16xf32> -> vector<4x16x16xf32>
    %c2 = arith.constant 2 : index
    %c0_23 = arith.constant 0 : index
    %c0_24 = arith.constant 0 : index
    %74 = vector.load %arg6[%c2, %c0_23, %c0_24] : memref<4x16x16xf32, #tpu.memory_space<vmem>>, vector<1x16x16xf32>
    %75 = vector.shape_cast %74 : vector<1x16x16xf32> to vector<16x16xf32>
    %76 = vector.shape_cast %75 : vector<16x16xf32> to vector<1x16x16xf32>
    %77 = vector.broadcast %76 : vector<1x16x16xf32> to vector<4x16x16xf32>
    %78 = arith.addf %73, %77 : vector<4x16x16xf32>
    %79 = arith.addf %78, %7 : vector<4x16x16xf32>
    %cst_25 = arith.constant dense<0xFF800000> : vector<4x16xf32>
    %80 = vector.multi_reduction <maximumf>, %79, %cst_25 [2] : vector<4x16x16xf32> to vector<4x16xf32>
    %81 = vector.shape_cast %80 : vector<4x16xf32> to vector<4x16x1xf32>
    %82 = vector.broadcast %81 : vector<4x16x1xf32> to vector<4x16x16xf32>
    %83 = arith.subf %79, %82 : vector<4x16x16xf32>
    %84 = math.exp %83 : vector<4x16x16xf32>
    %cst_26 = arith.constant dense<0.000000e+00> : vector<4x16xf32>
    %85 = vector.multi_reduction <add>, %84, %cst_26 [2] : vector<4x16x16xf32> to vector<4x16xf32>
    %86 = vector.shape_cast %85 : vector<4x16xf32> to vector<4x16x1xf32>
    %87 = tpu.reciprocal %86 {approx = true} : vector<4x16x1xf32> -> vector<4x16x1xf32>
    %88 = vector.broadcast %87 : vector<4x16x1xf32> to vector<4x16x16xf32>
    %89 = arith.mulf %84, %88 : vector<4x16x16xf32>
    %90 = arith.truncf %89 : vector<4x16x16xf32> to vector<4x16x16xbf16>
    %cst_27 = arith.constant dense<0.000000e+00> : vector<4x16x8xf32>
    %91 = tpu.matmul %90, %72, %cst_27 {dimension_numbers = #tpu.dot_dimension_numbers<[2], [1], [1], [2], [0, 0, 0, 1, 1, 2], [0], [0]>} : vector<4x16x16xbf16>, vector<4x16x8xbf16>, vector<4x16x8xf32> -> vector<4x16x8xf32>
    %92 = vector.extract_strided_slice %6 {offsets = [0, 24], sizes = [64, 8], strides = [1, 1]} : vector<64x96xf32> to vector<64x8xf32>
    %93 = vector.shape_cast %92 : vector<64x8xf32> to vector<4x16x8xf32>
    %94 = arith.truncf %93 : vector<4x16x8xf32> to vector<4x16x8xbf16>
    %95 = vector.extract_strided_slice %6 {offsets = [0, 56], sizes = [64, 8], strides = [1, 1]} : vector<64x96xf32> to vector<64x8xf32>
    %96 = vector.shape_cast %95 : vector<64x8xf32> to vector<4x16x8xf32>
    %97 = arith.truncf %96 : vector<4x16x8xf32> to vector<4x16x8xbf16>
    %98 = vector.extract_strided_slice %6 {offsets = [0, 88], sizes = [64, 8], strides = [1, 1]} : vector<64x96xf32> to vector<64x8xf32>
    %99 = vector.shape_cast %98 : vector<64x8xf32> to vector<4x16x8xf32>
    %100 = arith.truncf %99 : vector<4x16x8xf32> to vector<4x16x8xbf16>
    %cst_28 = arith.constant dense<0.000000e+00> : vector<4x16x16xf32>
    %101 = tpu.matmul %94, %97, %cst_28 {dimension_numbers = #tpu.dot_dimension_numbers<[2], [2], [1], [1], [0, 0, 0, 1, 1, 1], [0], [0]>} : vector<4x16x8xbf16>, vector<4x16x8xbf16>, vector<4x16x16xf32> -> vector<4x16x16xf32>
    %c3 = arith.constant 3 : index
    %c0_29 = arith.constant 0 : index
    %c0_30 = arith.constant 0 : index
    %102 = vector.load %arg6[%c3, %c0_29, %c0_30] : memref<4x16x16xf32, #tpu.memory_space<vmem>>, vector<1x16x16xf32>
    %103 = vector.shape_cast %102 : vector<1x16x16xf32> to vector<16x16xf32>
    %104 = vector.shape_cast %103 : vector<16x16xf32> to vector<1x16x16xf32>
    %105 = vector.broadcast %104 : vector<1x16x16xf32> to vector<4x16x16xf32>
    %106 = arith.addf %101, %105 : vector<4x16x16xf32>
    %107 = arith.addf %106, %7 : vector<4x16x16xf32>
    %cst_31 = arith.constant dense<0xFF800000> : vector<4x16xf32>
    %108 = vector.multi_reduction <maximumf>, %107, %cst_31 [2] : vector<4x16x16xf32> to vector<4x16xf32>
    %109 = vector.shape_cast %108 : vector<4x16xf32> to vector<4x16x1xf32>
    %110 = vector.broadcast %109 : vector<4x16x1xf32> to vector<4x16x16xf32>
    %111 = arith.subf %107, %110 : vector<4x16x16xf32>
    %112 = math.exp %111 : vector<4x16x16xf32>
    %cst_32 = arith.constant dense<0.000000e+00> : vector<4x16xf32>
    %113 = vector.multi_reduction <add>, %112, %cst_32 [2] : vector<4x16x16xf32> to vector<4x16xf32>
    %114 = vector.shape_cast %113 : vector<4x16xf32> to vector<4x16x1xf32>
    %115 = tpu.reciprocal %114 {approx = true} : vector<4x16x1xf32> -> vector<4x16x1xf32>
    %116 = vector.broadcast %115 : vector<4x16x1xf32> to vector<4x16x16xf32>
    %117 = arith.mulf %112, %116 : vector<4x16x16xf32>
    %118 = arith.truncf %117 : vector<4x16x16xf32> to vector<4x16x16xbf16>
    %cst_33 = arith.constant dense<0.000000e+00> : vector<4x16x8xf32>
    %119 = tpu.matmul %118, %100, %cst_33 {dimension_numbers = #tpu.dot_dimension_numbers<[2], [1], [1], [2], [0, 0, 0, 1, 1, 2], [0], [0]>} : vector<4x16x16xbf16>, vector<4x16x8xbf16>, vector<4x16x8xf32> -> vector<4x16x8xf32>
    %120 = tpu.concatenate %35, %63, %91, %119 in 2 : vector<4x16x8xf32>, vector<4x16x8xf32>, vector<4x16x8xf32>, vector<4x16x8xf32> -> vector<4x16x32xf32>
    %121 = vector.shape_cast %120 : vector<4x16x32xf32> to vector<64x32xf32>
    %122 = arith.truncf %121 : vector<64x32xf32> to vector<64x32xbf16>
    %c0_34 = arith.constant 0 : index
    %c0_35 = arith.constant 0 : index
    %123 = vector.load %arg4[%c0_34, %c0_35] : memref<32x32xbf16, #tpu.memory_space<vmem>>, vector<32x32xbf16>
    %cst_36 = arith.constant dense<0.000000e+00> : vector<64x32xf32>
    %124 = tpu.matmul %122, %123, %cst_36 {dimension_numbers = #tpu.dot_dimension_numbers<[1], [0], [0], [1], [0, 0, 1, 1], [], []>} : vector<64x32xbf16>, vector<32x32xbf16>, vector<64x32xf32> -> vector<64x32xf32>
    %c0_37 = arith.constant 0 : index
    %c0_38 = arith.constant 0 : index
    %125 = vector.load %arg5[%c0_37, %c0_38] : memref<1x32xf32, #tpu.memory_space<vmem>>, vector<1x32xf32>
    %126 = vector.broadcast %125 : vector<1x32xf32> to vector<64x32xf32>
    %127 = arith.addf %124, %126 : vector<64x32xf32>
    %128 = vector.shape_cast %127 : vector<64x32xf32> to vector<4x16x32xf32>
    %c0_39 = arith.constant 0 : index
    %c0_40 = arith.constant 0 : index
    %c0_41 = arith.constant 0 : index
    %129 = vector.load %arg8[%c0_39, %c0_40, %c0_41] : memref<4x16x32xf32, #tpu.memory_space<vmem>>, vector<4x16x32xf32>
    tpu.vector_store %arg8[%c0_39, %c0_40, %c0_41], %128 {strides = array<i32>} : memref<4x16x32xf32, #tpu.memory_space<vmem>>, vector<4x16x32xf32>,
    return
  }
  func.func @transform_0(%arg0: i32) -> (i32, i32, i32) {
    %c0_i32 = arith.constant 0 : i32
    %c0_i32_0 = arith.constant 0 : i32
    %c0_i32_1 = arith.constant 0 : i32
    return %arg0, %c0_i32, %c0_i32_0 : i32, i32, i32
  }
  func.func @transform_1(%arg0: i32) -> (i32, i32) {
    %c0_i32 = arith.constant 0 : i32
    %c0_i32_0 = arith.constant 0 : i32
    %c0_i32_1 = arith.constant 0 : i32
    return %c0_i32, %c0_i32_0 : i32, i32
  }
  func.func @transform_2(%arg0: i32) -> (i32, i32) {
    %c0_i32 = arith.constant 0 : i32
    %c0_i32_0 = arith.constant 0 : i32
    %c0_i32_1 = arith.constant 0 : i32
    return %c0_i32, %c0_i32_0 : i32, i32
  }
  func.func @transform_3(%arg0: i32) -> (i32, i32) {
    %c0_i32 = arith.constant 0 : i32
    %c0_i32_0 = arith.constant 0 : i32
    %c0_i32_1 = arith.constant 0 : i32
    return %c0_i32, %c0_i32_0 : i32, i32
  }
  func.func @transform_4(%arg0: i32) -> (i32, i32) {
    %c0_i32 = arith.constant 0 : i32
    %c0_i32_0 = arith.constant 0 : i32
    %c0_i32_1 = arith.constant 0 : i32
    return %c0_i32, %c0_i32_0 : i32, i32
  }
  func.func @transform_5(%arg0: i32) -> (i32, i32, i32) {
    %c0_i32 = arith.constant 0 : i32
    %c0_i32_0 = arith.constant 0 : i32
    %c0_i32_1 = arith.constant 0 : i32
    %c0_i32_2 = arith.constant 0 : i32
    return %c0_i32, %c0_i32_0, %c0_i32_1 : i32, i32, i32
  }
  func.func @transform_6(%arg0: i32) -> (i32, i32, i32) {
    %c0_i32 = arith.constant 0 : i32
    %c0_i32_0 = arith.constant 0 : i32
    %c0_i32_1 = arith.constant 0 : i32
    %c0_i32_2 = arith.constant 0 : i32
    return %c0_i32, %c0_i32_0, %c0_i32_1 : i32, i32, i32
  }
  func.func @transform_7(%arg0: i32) -> (i32, i32, i32) {
    %c0_i32 = arith.constant 0 : i32
    %c0_i32_0 = arith.constant 0 : i32
    %c0_i32_1 = arith.constant 0 : i32
    return %arg0, %c0_i32, %c0_i32_0 : i32, i32, i32
  }
}

</mosaic_0001>

<llo_original>
// kernel: tpu_custom_call.1
$region0: #{tpu_custom_call.1}
  #allocation0 [shape = 'u32[]', space=smem, size = 0x4, offset = 0x4, fixed_abs, tag = 'smem constant byte address 0x4 - core index']
  #allocation1 [shape = 'u32[144,128]{1,0:T(1,128)}', space=vmem, size = 0x12000, scoped, tag = 'internal scratch']
  %s0 = inlined_call_operand.hbm [shape: bf16[8,16,32], index: 0, kind: input, shape index: {}]
  %s1 = inlined_call_operand.hbm [shape: bf16[32,96], index: 1, kind: input, shape index: {}]
  %s2 = inlined_call_operand.vmem [shape: f32[1,96], index: 2, kind: input, shape index: {}]
  %s3 = inlined_call_operand.hbm [shape: bf16[32,32], index: 3, kind: input, shape index: {}]
  %s4 = inlined_call_operand.vmem [shape: f32[1,32], index: 4, kind: input, shape index: {}]
  %s5 = inlined_call_operand.hbm [shape: f32[4,16,16], index: 5, kind: input, shape index: {}]
  %s6 = inlined_call_operand.hbm [shape: f32[4,16,16], index: 6, kind: input, shape index: {}]
  %s7 = inlined_call_operand.hbm [shape: f32[8,16,32], index: 7, kind: output, shape index: {}]
  %s8 = sld [smem:[#allocation0]]
  $region81: #{tpu_custom_call.1} parent=0
    _
  %s10 = ssub.s32 1, %s8
  %s11 = scalar_select 0, %s10, %s8
  $region1: #{tpu_custom_call.1} parent=0
    #allocation2 [shape = 'u8[32768]{0}', space=vmem, size = 0x8000, scoped, tag = 'input window, operand 0']
    #allocation3 [shape = 's32[2]{0}', space=sflag, size = 0x8, scoped, tag = 'scoped memory for tpu_custom_call.1']
    #allocation4 [shape = 's32[2]{0}', space=sflag, size = 0x8, scoped, tag = 'scoped memory for tpu_custom_call.1']
    #allocation5 [shape = 'u8[8192]{0}', space=vmem, size = 0x2000, scoped, tag = 'input window, operand 1, single buffered']
    #allocation6 [shape = 's32[1]{0}', space=sflag, size = 0x4, scoped, tag = 'scoped memory for tpu_custom_call.1']
    #allocation7 [shape = 'u8[8192]{0}', space=vmem, size = 0x2000, scoped, tag = 'input window, operand 3, single buffered']
    #allocation8 [shape = 'u8[32768]{0}', space=vmem, size = 0x8000, scoped, tag = 'input window, operand 5, single buffered']
    #allocation9 [shape = 's32[1]{0}', space=sflag, size = 0x4, scoped, tag = 'scoped memory for tpu_custom_call.1']
    #allocation10 [shape = 'u8[32768]{0}', space=vmem, size = 0x8000, scoped, tag = 'input window, operand 6, single buffered']
    #allocation11 [shape = 'u8[65536]{0}', space=vmem, size = 0x10000, scoped, tag = 'output window, operand 0']
    %12 = vsyncpa [#allocation3], 0
    %s13 = scalar_lea.sflag [#allocation3], 1
    %14 = vsyncpa %s13, 0
    %15 = vsyncpa [#allocation6], 0
    %16 = vsyncpa [#allocation9], 0
    %17 = vsyncpa [#allocation4], 0
    %s18 = scalar_lea.sflag [#allocation4], 1
    %19 = vsyncpa %s18, 0
    loop: start=0, step=1, limit=4
    $region2: #{tpu_custom_call.1} parent=1 // loop_pre_header
      _
    $region3: #{tpu_custom_call.1} parent=1 // loop_header
      %s21 = sphi 0, %s25
      %p22 = scmp.ge.s32.totalorder %s21, 4
      %s31 = sphi 0, %s33
      %s34 = sphi 0, %s31
      %s35 = sphi 0, %s34
      %s51 = sphi 0, %s35
      %s55 = sphi 0, %s55
      %s57 = sphi 0, %s55
      %s58 = sphi 0, %s57
      %s72 = sphi 0, %s58
      %s76 = sphi 0, %s76
      %s78 = sphi 0, %s76
      %s79 = sphi 0, %s78
      %s93 = sphi 0, %s79
      %s97 = sphi 0, %s97
      %s99 = sphi 0, %s97
      %s100 = sphi 0, %s99
      %s114 = sphi 0, %s100
      %s118 = sphi 0, %s118
      %s120 = sphi 0, %s118
      %s121 = sphi 0, %s120
      %s135 = sphi 0, %s121
      %s139 = sphi 0, %s139
      %s141 = sphi 0, %s139
      %s142 = sphi 0, %s141
      %s156 = sphi 0, %s142
      %s160 = sphi 0, %s160
      %s162 = sphi 0, %s160
      %s163 = sphi 0, %s162
      %s177 = sphi 0, %s163
      %s183 = sphi 0, %s185
      %s186 = sphi 0, %s183
      %s187 = sphi 0, %s186
      %s203 = sphi 0, %s187
    $region4: #{tpu_custom_call.1} parent=1 // loop_header_branch
      %24 = sbr.rel (%p22) target = $region8
    $region5: #{tpu_custom_call.1} parent=1 // loop_body
      %s26 = ssub.s32 %s21, 1
      %s27 = ssub.s32 %s21, 2
      %s28 = sadd.s32 %s21, 1
      %s29 = ssub.s32 %s21, %s28
      %p30 = scmp.eq.s32.totalorder %s29, 0
      %s32 = sadd.s32 %s31, 1
      %s33 = scalar_select %p30, %s31, %s32
      %p36 = pneg %p30
      %p37 = scmp.eq.s32.totalorder %s21, 1
      %p38 = por %p36, %p37
      %p39 = scmp.ne.s32.totalorder %s31, %s34
      %p40 = scmp.eq.s32.totalorder %s21, 0
      %p41 = por %p39, %p40
      %p42 = scmp.ne.s32.totalorder %s31, %s34
      %p43 = scmp.eq.s32.totalorder %s26, 1
      %p44 = por %p42, %p43
      %p45 = scmp.ne.s32.totalorder %s34, %s35
      %p46 = scmp.eq.s32.totalorder %s26, 0
      %p47 = por %p45, %p46
      %p48 = scmp.ne.s32.totalorder %s34, %s35
      %p49 = scmp.eq.s32.totalorder %s27, 1
      %p50 = por %p48, %p49
      %p52 = scmp.ne.s32.totalorder %s35, %s51
      %p53 = scmp.eq.s32.totalorder %s27, 0
      %p54 = por %p52, %p53
      %s56 = sadd.s32 %s55, 1
      %p59 = scmp.eq.s32.totalorder %s21, 1
      %p60 = scmp.ne.s32.totalorder %s55, %s57
      %p61 = scmp.eq.s32.totalorder %s21, 0
      %p62 = por %p60, %p61
      %p63 = scmp.ne.s32.totalorder %s55, %s57
      %p64 = scmp.eq.s32.totalorder %s26, 1
      %p65 = por %p63, %p64
      %p66 = scmp.ne.s32.totalorder %s57, %s58
      %p67 = scmp.eq.s32.totalorder %s26, 0
      %p68 = por %p66, %p67
      %p69 = scmp.ne.s32.totalorder %s57, %s58
      %p70 = scmp.eq.s32.totalorder %s27, 1
      %p71 = por %p69, %p70
      %p73 = scmp.ne.s32.totalorder %s58, %s72
      %p74 = scmp.eq.s32.totalorder %s27, 0
      %p75 = por %p73, %p74
      %s77 = sadd.s32 %s76, 1
      %p80 = scmp.eq.s32.totalorder %s21, 1
      %p81 = scmp.ne.s32.totalorder %s76, %s78
      %p82 = scmp.eq.s32.totalorder %s21, 0
      %p83 = por %p81, %p82
      %p84 = scmp.ne.s32.totalorder %s76, %s78
      %p85 = scmp.eq.s32.totalorder %s26, 1
      %p86 = por %p84, %p85
      %p87 = scmp.ne.s32.totalorder %s78, %s79
      %p88 = scmp.eq.s32.totalorder %s26, 0
      %p89 = por %p87, %p88
      %p90 = scmp.ne.s32.totalorder %s78, %s79
      %p91 = scmp.eq.s32.totalorder %s27, 1
      %p92 = por %p90, %p91
      %p94 = scmp.ne.s32.totalorder %s79, %s93
      %p95 = scmp.eq.s32.totalorder %s27, 0
      %p96 = por %p94, %p95
      %s98 = sadd.s32 %s97, 1
      %p101 = scmp.eq.s32.totalorder %s21, 1
      %p102 = scmp.ne.s32.totalorder %s97, %s99
      %p103 = scmp.eq.s32.totalorder %s21, 0
      %p104 = por %p102, %p103
      %p105 = scmp.ne.s32.totalorder %s97, %s99
      %p106 = scmp.eq.s32.totalorder %s26, 1
      %p107 = por %p105, %p106
      %p108 = scmp.ne.s32.totalorder %s99, %s100
      %p109 = scmp.eq.s32.totalorder %s26, 0
      %p110 = por %p108, %p109
      %p111 = scmp.ne.s32.totalorder %s99, %s100
      %p112 = scmp.eq.s32.totalorder %s27, 1
      %p113 = por %p111, %p112
      %p115 = scmp.ne.s32.totalorder %s100, %s114
      %p116 = scmp.eq.s32.totalorder %s27, 0
      %p117 = por %p115, %p116
      %s119 = sadd.s32 %s118, 1
      %p122 = scmp.eq.s32.totalorder %s21, 1
      %p123 = scmp.ne.s32.totalorder %s118, %s120
      %p124 = scmp.eq.s32.totalorder %s21, 0
      %p125 = por %p123, %p124
      %p126 = scmp.ne.s32.totalorder %s118, %s120
      %p127 = scmp.eq.s32.totalorder %s26, 1
      %p128 = por %p126, %p127
      %p129 = scmp.ne.s32.totalorder %s120, %s121
      %p130 = scmp.eq.s32.totalorder %s26, 0
      %p131 = por %p129, %p130
      %p132 = scmp.ne.s32.totalorder %s120, %s121
      %p133 = scmp.eq.s32.totalorder %s27, 1
      %p134 = por %p132, %p133
      %p136 = scmp.ne.s32.totalorder %s121, %s135
      %p137 = scmp.eq.s32.totalorder %s27, 0
      %p138 = por %p136, %p137
      %s140 = sadd.s32 %s139, 1
      %p143 = scmp.eq.s32.totalorder %s21, 1
      %p144 = scmp.ne.s32.totalorder %s139, %s141
      %p145 = scmp.eq.s32.totalorder %s21, 0
      %p146 = por %p144, %p145
      %p147 = scmp.ne.s32.totalorder %s139, %s141
      %p148 = scmp.eq.s32.totalorder %s26, 1
      %p149 = por %p147, %p148
      %p150 = scmp.ne.s32.totalorder %s141, %s142
      %p151 = scmp.eq.s32.totalorder %s26, 0
      %p152 = por %p150, %p151
      %p153 = scmp.ne.s32.totalorder %s141, %s142
      %p154 = scmp.eq.s32.totalorder %s27, 1
      %p155 = por %p153, %p154
      %p157 = scmp.ne.s32.totalorder %s142, %s156
      %p158 = scmp.eq.s32.totalorder %s27, 0
      %p159 = por %p157, %p158
      %s161 = sadd.s32 %s160, 1
      %p164 = scmp.eq.s32.totalorder %s21, 1
      %p165 = scmp.ne.s32.totalorder %s160, %s162
      %p166 = scmp.eq.s32.totalorder %s21, 0
      %p167 = por %p165, %p166
      %p168 = scmp.ne.s32.totalorder %s160, %s162
      %p169 = scmp.eq.s32.totalorder %s26, 1
      %p170 = por %p168, %p169
      %p171 = scmp.ne.s32.totalorder %s162, %s163
      %p172 = scmp.eq.s32.totalorder %s26, 0
      %p173 = por %p171, %p172
      %p174 = scmp.ne.s32.totalorder %s162, %s163
      %p175 = scmp.eq.s32.totalorder %s27, 1
      %p176 = por %p174, %p175
      %p178 = scmp.ne.s32.totalorder %s163, %s177
      %p179 = scmp.eq.s32.totalorder %s27, 0
      %p180 = por %p178, %p179
      %s181 = ssub.s32 %s21, %s28
      %p182 = scmp.eq.s32.totalorder %s181, 0
      %s184 = sadd.s32 %s183, 1
      %s185 = scalar_select %p182, %s183, %s184
      %p188 = pneg %p182
      %p189 = scmp.eq.s32.totalorder %s21, 1
      %p190 = por %p188, %p189
      %p191 = scmp.ne.s32.totalorder %s183, %s186
      %p192 = scmp.eq.s32.totalorder %s21, 0
      %p193 = por %p191, %p192
      %p194 = scmp.ne.s32.totalorder %s183, %s186
      %p195 = scmp.eq.s32.totalorder %s26, 1
      %p196 = por %p194, %p195
      %p197 = scmp.ne.s32.totalorder %s186, %s187
      %p198 = scmp.eq.s32.totalorder %s26, 0
      %p199 = por %p197, %p198
      %p200 = scmp.ne.s32.totalorder %s186, %s187
      %p201 = scmp.eq.s32.totalorder %s27, 1
      %p202 = por %p200, %p201
      %p204 = scmp.ne.s32.totalorder %s187, %s203
      %p205 = scmp.eq.s32.totalorder %s27, 0
      %p206 = por %p204, %p205
      %p207 = scmp.le.s32.totalorder 1, %s21
      %p208 = scmp.lt.s32.totalorder %s21, 3
      %p209 = pnand %p207, %p208
      %p210 = pneg %p209
      // Predicated region
      $region9: #{tpu_custom_call.1} parent=5 // pred_check
        _
      $region10: #{tpu_custom_call.1} parent=5 // pred_check_branch
        %212 = sbr.rel (%p209) target = $region12
      $region11: #{tpu_custom_call.1} parent=5 // pred_region
        %s213 = ssub.s32 %s21, 1
        // Predicated region
        $region13: #{tpu_custom_call.1} parent=11 // pred_check
          %p214 = pneg %p68
        $region14: #{tpu_custom_call.1} parent=11 // pred_check_branch
          %216 = sbr.rel (%p214) target = $region16
        $region15: #{tpu_custom_call.1} parent=11 // pred_region
          %s218 = ssub.s32 256, 256
          %219 = vsyncadd [#allocation6], %s218
          %s220 = sshll.u32 [#allocation5], 4
          %s221 = int_to_ptr.vmem [resolvable:$true] %s220
          %226 = dma.hbm_to_vmem [thread:$0]  %s1, 256, %s221, [#allocation6], 64, 64, 4
        $region16: #{tpu_custom_call.1} parent=11 // pred_fallthru
          _
        // Predicated region
        $region17: #{tpu_custom_call.1} parent=11 // pred_check
          %p227 = pneg %p89
        $region18: #{tpu_custom_call.1} parent=11 // pred_check_branch
          %229 = sbr.rel (%p227) target = $region20
        $region19: #{tpu_custom_call.1} parent=11 // pred_region
          _
        $region20: #{tpu_custom_call.1} parent=11 // pred_fallthru
          _
        // Predicated region
        $region21: #{tpu_custom_call.1} parent=11 // pred_check
          %p230 = pneg %p110
        $region22: #{tpu_custom_call.1} parent=11 // pred_check_branch
          %232 = sbr.rel (%p230) target = $region24
        $region23: #{tpu_custom_call.1} parent=11 // pred_region
          %s234 = ssub.s32 256, 256
          %235 = vsyncadd [#allocation6], %s234
          %s236 = sshll.u32 [#allocation7], 4
          %s237 = int_to_ptr.vmem [resolvable:$true] %s236
          %242 = dma.hbm_to_vmem [thread:$0]  %s3, 256, %s237, [#allocation6], 64, 64, 4
        $region24: #{tpu_custom_call.1} parent=11 // pred_fallthru
          _
        // Predicated region
        $region25: #{tpu_custom_call.1} parent=11 // pred_check
          %p243 = pneg %p131
        $region26: #{tpu_custom_call.1} parent=11 // pred_check_branch
          %245 = sbr.rel (%p243) target = $region28
        $region27: #{tpu_custom_call.1} parent=11 // pred_region
          _
        $region28: #{tpu_custom_call.1} parent=11 // pred_fallthru
          _
        // Predicated region
        $region29: #{tpu_custom_call.1} parent=11 // pred_check
          %p246 = pneg %p152
        $region30: #{tpu_custom_call.1} parent=11 // pred_check_branch
          %248 = sbr.rel (%p246) target = $region32
        $region31: #{tpu_custom_call.1} parent=11 // pred_region
          %s250 = ssub.s32 1024, 1024
          %251 = vsyncadd [#allocation9], %s250
          %s252 = sshll.u32 [#allocation8], 4
          %s253 = int_to_ptr.vmem [resolvable:$true] %s252
          %258 = dma.hbm_to_vmem [thread:$0]  %s5, 1024, %s253, [#allocation9], 128, 128, 8
        $region32: #{tpu_custom_call.1} parent=11 // pred_fallthru
          _
        // Predicated region
        $region33: #{tpu_custom_call.1} parent=11 // pred_check
          %p259 = pneg %p173
        $region34: #{tpu_custom_call.1} parent=11 // pred_check_branch
          %261 = sbr.rel (%p259) target = $region36
        $region35: #{tpu_custom_call.1} parent=11 // pred_region
          %s263 = ssub.s32 1024, 1024
          %264 = vsyncadd [#allocation9], %s263
          %s265 = sshll.u32 [#allocation10], 4
          %s266 = int_to_ptr.vmem [resolvable:$true] %s265
          %271 = dma.hbm_to_vmem [thread:$0]  %s6, 1024, %s266, [#allocation9], 128, 128, 8
        $region36: #{tpu_custom_call.1} parent=11 // pred_fallthru
          _
      $region12: #{tpu_custom_call.1} parent=5 // pred_fallthru
        _
      %p272 = scmp.lt.s32.totalorder %s21, 2
      // Predicated region
      $region37: #{tpu_custom_call.1} parent=5 // pred_check
        %p273 = pneg %p272
      $region38: #{tpu_custom_call.1} parent=5 // pred_check_branch
        %275 = sbr.rel (%p273) target = $region40
      $region39: #{tpu_custom_call.1} parent=5 // pred_region
        // Predicated region
        $region41: #{tpu_custom_call.1} parent=39 // pred_check
          %p276 = pneg %p41
        $region42: #{tpu_custom_call.1} parent=39 // pred_check_branch
          %278 = sbr.rel (%p276) target = $region44
        $region43: #{tpu_custom_call.1} parent=39 // pred_region
          %s279 = sand.u32 %s31, 1
          %s280 = scalar_lea.sflag [#allocation3], %s279
          %s281 = sand.u32 %s31, 1
          %s282 = smul.addr %s281, 32
          %s283 = scalar_lea.vmem [#allocation2], %s282
          %s284 = smul.u32 4, %s21
          %s286 = ssub.s32 512, 512
          %287 = vsyncadd %s280, %s286
          %s288 = smul.addr %s284, 2
          %s289 = smul.addr %s288, 64
          %s290 = scalar_lea.hbm %s0, %s289
          %s291 = sshll.u32 %s283, 4
          %s292 = int_to_ptr.vmem [resolvable:$true] %s291
          %297 = dma.hbm_to_vmem [thread:$0]  %s290, 512, %s292, %s280, 64, 64, 4
        $region44: #{tpu_custom_call.1} parent=39 // pred_fallthru
          _
      $region40: #{tpu_custom_call.1} parent=5 // pred_fallthru
        _
      %p298 = scmp.le.s32.totalorder 1, %s21
      %p299 = scmp.lt.s32.totalorder %s21, 3
      %p300 = pnand %p298, %p299
      %p301 = pneg %p300
      // Predicated region
      $region45: #{tpu_custom_call.1} parent=5 // pred_check
        _
      $region46: #{tpu_custom_call.1} parent=5 // pred_check_branch
        %303 = sbr.rel (%p300) target = $region48
      $region47: #{tpu_custom_call.1} parent=5 // pred_region
        %s304 = ssub.s32 %s21, 1
        %s305 = sand.u32 %s34, 1
        %s306 = scalar_lea.sflag [#allocation3], %s305
        %s307 = sand.u32 %s34, 1
        %s308 = smul.addr %s307, 32
        %s309 = scalar_lea.vmem [#allocation2], %s308
        // Predicated region
        $region49: #{tpu_custom_call.1} parent=47 // pred_check
          %p310 = pneg %p47
        $region50: #{tpu_custom_call.1} parent=47 // pred_check_branch
          %312 = sbr.rel (%p310) target = $region52
        $region51: #{tpu_custom_call.1} parent=47 // pred_region
          %313 = dma.done %s306, 512
        $region52: #{tpu_custom_call.1} parent=47 // pred_fallthru
          _
        // Predicated region
        $region53: #{tpu_custom_call.1} parent=47 // pred_check
          %p314 = pneg %p68
        $region54: #{tpu_custom_call.1} parent=47 // pred_check_branch
          %316 = sbr.rel (%p314) target = $region56
        $region55: #{tpu_custom_call.1} parent=47 // pred_region
          %317 = dma.done [#allocation6], 256
        $region56: #{tpu_custom_call.1} parent=47 // pred_fallthru
          _
        // Predicated region
        $region57: #{tpu_custom_call.1} parent=47 // pred_check
          %p318 = pneg %p110
        $region58: #{tpu_custom_call.1} parent=47 // pred_check_branch
          %320 = sbr.rel (%p318) target = $region60
        $region59: #{tpu_custom_call.1} parent=47 // pred_region
          %321 = dma.done [#allocation6], 256
        $region60: #{tpu_custom_call.1} parent=47 // pred_fallthru
          _
        // Predicated region
        $region61: #{tpu_custom_call.1} parent=47 // pred_check
          %p322 = pneg %p152
        $region62: #{tpu_custom_call.1} parent=47 // pred_check_branch
          %324 = sbr.rel (%p322) target = $region64
        $region63: #{tpu_custom_call.1} parent=47 // pred_region
          %325 = dma.done [#allocation9], 1024
        $region64: #{tpu_custom_call.1} parent=47 // pred_fallthru
          _
        // Predicated region
        $region65: #{tpu_custom_call.1} parent=47 // pred_check
          %p326 = pneg %p173
        $region66: #{tpu_custom_call.1} parent=47 // pred_check_branch
          %328 = sbr.rel (%p326) target = $region68
        $region67: #{tpu_custom_call.1} parent=47 // pred_region
          %329 = dma.done [#allocation9], 1024
        $region68: #{tpu_custom_call.1} parent=47 // pred_fallthru
          _
        %s330 = sand.u32 %s34, 1
        %s331 = scalar_lea.sflag [#allocation3], %s330
        %s332 = sand.u32 %s34, 1
        %s333 = smul.addr %s332, 32
        %s334 = scalar_lea.vmem [#allocation2], %s333
        %p335 = pneg %p47
        %p336 = pneg %p44
        %p337 = pneg %p68
        %p338 = pneg %p65
        %p339 = pneg %p89
        %p340 = pneg %p86
        %p341 = pneg %p110
        %p342 = pneg %p107
        %p343 = pneg %p131
        %p344 = pneg %p128
        %p345 = pneg %p152
        %p346 = pneg %p149
        %p347 = pneg %p173
        %p348 = pneg %p170
        %p349 = pneg %p199
        %p350 = pneg %p196
        %s351 = sand.u32 %s186, 1
        %s352 = scalar_lea.sflag [#allocation4], %s351
        %s353 = sand.u32 %s186, 1
        %s354 = smul.addr %s353, 64
        %s355 = scalar_lea.vmem [#allocation11], %s354
        %s356 = smul.u32 4, %s26
        %s357 = smul.u32 4, %s26
        %v359 = vld [vmem:[%s309] sm:$0xf]
        %v360 = vld [vmem:[%s309 + $0x4] sm:$0xf]
        %v361 = vld [vmem:[%s309 + $0x8] sm:$0xf]
        %v362 = vld [vmem:[%s309 + $0xc] sm:$0xf]
        %v363 = vld [vmem:[%s309 + $0x10] sm:$0xf]
        %v364 = vld [vmem:[%s309 + $0x14] sm:$0xf]
        %v365 = vld [vmem:[%s309 + $0x18] sm:$0xf]
        %v366 = vld [vmem:[%s309 + $0x1c] sm:$0xf]
        %v367 = vld [vmem:[#allocation5] sm:$0xf]
        %v368 = vld [vmem:[#allocation5 + $0x4] sm:$0xf]
        %v369 = vld [vmem:[#allocation5 + $0x8] sm:$0xf]
        %v370 = vld [vmem:[#allocation5 + $0xc] sm:$0xf]
        %v371 = vld [vmem:[%s2] sm:$0x1]
        %v373 = vlaneseq
        %v374 = vshrl.u32 %v373, 7
        %v375 = vsub.s32 0, %v374
        %v376 = vrot.slane %v371, %v375
        %v386 = vunpack.c.l.b16 %v359
        %v387 = vunpack.c.l.b16 %v360
        %v388 = vunpack.c.l.b16 %v361
        %v389 = vunpack.c.l.b16 %v362
        %v390 = vunpack.c.l.b16 %v363
        %v391 = vunpack.c.l.b16 %v364
        %v392 = vunpack.c.l.b16 %v365
        %v393 = vunpack.c.l.b16 %v366
        %v394 = vpack.c.b16 %v387, %v386
        %v395 = vpack.c.b16 %v389, %v388
        %v396 = vpack.c.b16 %v391, %v390
        %v397 = vpack.c.b16 %v393, %v392
        %v402 = vunpack.c.l.b16 %v367
        %v403 = vunpack.c.l.b16 %v368
        %v404 = vunpack.c.l.b16 %v369
        %v405 = vunpack.c.l.b16 %v370
        %v406 = vpack.c.b16 %v403, %v402
        %v407 = vpack.c.b16 %v405, %v404
        %vm410 = vcmask 261120
        %v412 = vsel %vm410, %v394, 0
        %v415 = vsel %vm410, %v395, 0
        %v418 = vsel %vm410, %v396, 0
        %v421 = vsel %vm410, %v397, 0
        %423 = vmatprep.subr.bf16.mxu0 0
        %424 = vmatpush1.bf16.msra.mxu0 %v406
        %425 = vmatprep.subr.bf16.mxu0 0
        %426 = vmatpush1.bf16.msra.mxu0 %v407
        %427 = vmatprep.subr.bf16.mxu0 0
        %428 = vmatpush1.bf16.msra.mxu0 0
        %429 = vmatprep.subr.bf16.mxu0 0
        %430 = vmatpush1.bf16.msra.mxu0 0
        %431 = vmatprep.subr.bf16.mxu0 0
        %432 = vmatpush1.bf16.msra.mxu0 0
        %433 = vmatprep.subr.bf16.mxu0 0
        %434 = vmatpush1.bf16.msra.mxu0 0
        %435 = vmatprep.subr.bf16.mxu0 0
        %436 = vmatpush1.bf16.msra.mxu0 0
        %437 = vmatprep.subr.bf16.mxu0 0
        %438 = vmatpush1.bf16.msra.mxu0 0
        %439 = vmatprep.subr.bf16.mxu0 0
        %440 = vmatpush1.bf16.msra.mxu0 0
        %441 = vmatprep.subr.bf16.mxu0 0
        %442 = vmatpush1.bf16.msra.mxu0 0
        %443 = vmatprep.subr.bf16.mxu0 0
        %444 = vmatpush1.bf16.msra.mxu0 0
        %445 = vmatprep.subr.bf16.mxu0 0
        %446 = vmatpush1.bf16.msra.mxu0 0
        %447 = vmatprep.subr.bf16.mxu0 0
        %448 = vmatpush1.bf16.msra.mxu0 0
        %449 = vmatprep.subr.bf16.mxu0 0
        %450 = vmatpush1.bf16.msra.mxu0 0
        %451 = vmatprep.subr.bf16.mxu0 0
        %452 = vmatpush1.bf16.msra.mxu0 0
        %453 = vmatprep.subr.bf16.mxu0 0
        %454 = vmatpush1.bf16.msra.mxu0 0
        %455 = vmatprep.mubr.bf16.mxu0 0
        %456 = vmatmul.mubr.bf16.gmra.mrb[0].mxu0 %v412
        %v457 = vpop.f32.mrb[0].mxu0
        %v458 = vadd.f32 %v376, %v457
        %v459 = vpop.f32.mrb[0].mxu0
        %v460 = vpop.f32.mrb[0].mxu0
        %v461 = vadd.f32 %v376, %v460
        %v462 = vpop.f32.mrb[0].mxu0
        %463 = vmatprep.mubr.bf16.mxu0 0
        %464 = vmatmul.mubr.bf16.gmra.mrb[0].mxu0 %v415
        %v465 = vpop.f32.mrb[0].mxu0
        %v466 = vadd.f32 %v376, %v465
        %v467 = vpop.f32.mrb[0].mxu0
        %v468 = vpop.f32.mrb[0].mxu0
        %v469 = vadd.f32 %v376, %v468
        %v470 = vpop.f32.mrb[0].mxu0
        %471 = vmatprep.mubr.bf16.mxu0 0
        %472 = vmatmul.mubr.bf16.gmra.mrb[0].mxu0 %v418
        %v473 = vpop.f32.mrb[0].mxu0
        %v474 = vadd.f32 %v376, %v473
        %v475 = vpop.f32.mrb[0].mxu0
        %v476 = vpop.f32.mrb[0].mxu0
        %v477 = vadd.f32 %v376, %v476
        %v478 = vpop.f32.mrb[0].mxu0
        %479 = vmatprep.mubr.bf16.mxu0 0
        %480 = vmatmul.mubr.bf16.gmra.mrb[0].mxu0 %v421
        %v481 = vpop.f32.mrb[0].mxu0
        %v482 = vadd.f32 %v376, %v481
        %v483 = vpop.f32.mrb[0].mxu0
        %v484 = vpop.f32.mrb[0].mxu0
        %v485 = vadd.f32 %v376, %v484
        %v486 = vpop.f32.mrb[0].mxu0
        %487 = vdwg.mxu0
        %v488 = vld [vmem:[#allocation10] sm:$0xff]
        %v489 = vld [vmem:[#allocation10 + $0x8] sm:$0xff]
        %v490 = vld [vmem:[#allocation10 + $0x10] sm:$0xff]
        %v491 = vld [vmem:[#allocation10 + $0x18] sm:$0xff]
        %v492 = vld [vmem:[#allocation10 + $0x20] sm:$0xff]
        %v493 = vld [vmem:[#allocation10 + $0x28] sm:$0xff]
        %v494 = vld [vmem:[#allocation10 + $0x30] sm:$0xff]
        %v495 = vld [vmem:[#allocation10 + $0x38] sm:$0xff]
        %v496 = vpack.c.bf16 %v461, %v458
        %v497 = vpack.c.bf16 %v469, %v466
        %v498 = vpack.c.bf16 %v477, %v474
        %v499 = vpack.c.bf16 %v485, %v482
        %v500 = vld [vmem:[#allocation8] sm:$0xff]
        %v501 = vld [vmem:[#allocation8 + $0x8] sm:$0xff]
        %503 = vrot.lane.b32.xlu0 %v496, 96
        %v504 = vpop.permute.xlu0 %503
        %vm505 = vcmask 64512
        %v507 = vsel %vm505, %v496, 0
        %v510 = vsel %vm505, %v504, 0
        %512 = vmatprep.subr.bf16.mxu0 0
        %513 = vmatpush1.bf16.xpose.msra.mxu0 %v510
        %514 = vmatprep.subr.bf16.mxu0 0
        %515 = vmatpush1.bf16.xpose.msra.mxu0 0
        %516 = vmatprep.subr.bf16.mxu0 0
        %517 = vmatpush1.bf16.xpose.msra.mxu0 0
        %518 = vmatprep.subr.bf16.mxu0 0
        %519 = vmatpush1.bf16.xpose.msra.mxu0 0
        %520 = vmatprep.subr.bf16.mxu0 0
        %521 = vmatpush1.bf16.xpose.msra.mxu0 0
        %522 = vmatprep.subr.bf16.mxu0 0
        %523 = vmatpush1.bf16.xpose.msra.mxu0 0
        %524 = vmatprep.subr.bf16.mxu0 0
        %525 = vmatpush1.bf16.xpose.msra.mxu0 0
        %526 = vmatprep.subr.bf16.mxu0 0
        %527 = vmatpush1.bf16.xpose.msra.mxu0 0
        %528 = vmatprep.subr.bf16.mxu0 0
        %529 = vmatpush1.bf16.xpose.msra.mxu0 0
        %530 = vmatprep.subr.bf16.mxu0 0
        %531 = vmatpush1.bf16.xpose.msra.mxu0 0
        %532 = vmatprep.subr.bf16.mxu0 0
        %533 = vmatpush1.bf16.xpose.msra.mxu0 0
        %534 = vmatprep.subr.bf16.mxu0 0
        %535 = vmatpush1.bf16.xpose.msra.mxu0 0
        %536 = vmatprep.subr.bf16.mxu0 0
        %537 = vmatpush1.bf16.xpose.msra.mxu0 0
        %538 = vmatprep.subr.bf16.mxu0 0
        %539 = vmatpush1.bf16.xpose.msra.mxu0 0
        %540 = vmatprep.subr.bf16.mxu0 0
        %541 = vmatpush1.bf16.xpose.msra.mxu0 0
        %542 = vmatprep.subr.bf16.mxu0 0
        %543 = vmatpush1.bf16.xpose.msra.mxu0 0
        %544 = vmatprep.mubr.bf16.mxu0 0
        %545 = vmatmul.mubr.bf16.gmra.mrb[0].mxu0 %v507
        %v546 = vpop.f32.mrb[0].mxu0
        %v547 = vadd.f32 %v500, %v546
        %v548 = vpop.f32.mrb[0].mxu0
        %v549 = vpop.f32.mrb[0].mxu0
        %v550 = vadd.f32 %v501, %v549
        %v551 = vpop.f32.mrb[0].mxu0
        %552 = vdwg.mxu0
        %554 = vrot.lane.b32.xlu0 %v497, 96
        %v555 = vpop.permute.xlu0 %554
        %v557 = vsel %vm505, %v497, 0
        %v560 = vsel %vm505, %v555, 0
        %562 = vmatprep.subr.bf16.mxu0 0
        %563 = vmatpush1.bf16.xpose.msra.mxu0 %v560
        %564 = vmatprep.subr.bf16.mxu0 0
        %565 = vmatpush1.bf16.xpose.msra.mxu0 0
        %566 = vmatprep.subr.bf16.mxu0 0
        %567 = vmatpush1.bf16.xpose.msra.mxu0 0
        %568 = vmatprep.subr.bf16.mxu0 0
        %569 = vmatpush1.bf16.xpose.msra.mxu0 0
        %570 = vmatprep.subr.bf16.mxu0 0
        %571 = vmatpush1.bf16.xpose.msra.mxu0 0
        %572 = vmatprep.subr.bf16.mxu0 0
        %573 = vmatpush1.bf16.xpose.msra.mxu0 0
        %574 = vmatprep.subr.bf16.mxu0 0
        %575 = vmatpush1.bf16.xpose.msra.mxu0 0
        %576 = vmatprep.subr.bf16.mxu0 0
        %577 = vmatpush1.bf16.xpose.msra.mxu0 0
        %578 = vmatprep.subr.bf16.mxu0 0
        %579 = vmatpush1.bf16.xpose.msra.mxu0 0
        %580 = vmatprep.subr.bf16.mxu0 0
        %581 = vmatpush1.bf16.xpose.msra.mxu0 0
        %582 = vmatprep.subr.bf16.mxu0 0
        %583 = vmatpush1.bf16.xpose.msra.mxu0 0
        %584 = vmatprep.subr.bf16.mxu0 0
        %585 = vmatpush1.bf16.xpose.msra.mxu0 0
        %586 = vmatprep.subr.bf16.mxu0 0
        %587 = vmatpush1.bf16.xpose.msra.mxu0 0
        %588 = vmatprep.subr.bf16.mxu0 0
        %589 = vmatpush1.bf16.xpose.msra.mxu0 0
        %590 = vmatprep.subr.bf16.mxu0 0
        %591 = vmatpush1.bf16.xpose.msra.mxu0 0
        %592 = vmatprep.subr.bf16.mxu0 0
        %593 = vmatpush1.bf16.xpose.msra.mxu0 0
        %594 = vmatprep.mubr.bf16.mxu0 0
        %595 = vmatmul.mubr.bf16.gmra.mrb[0].mxu0 %v557
        %v596 = vpop.f32.mrb[0].mxu0
        %v597 = vadd.f32 %v500, %v596
        %v598 = vpop.f32.mrb[0].mxu0
        %v599 = vpop.f32.mrb[0].mxu0
        %v600 = vadd.f32 %v501, %v599
        %v601 = vpop.f32.mrb[0].mxu0
        %602 = vdwg.mxu0
        %604 = vrot.lane.b32.xlu0 %v498, 96
        %v605 = vpop.permute.xlu0 %604
        %v607 = vsel %vm505, %v498, 0
        %v610 = vsel %vm505, %v605, 0
        %612 = vmatprep.subr.bf16.mxu0 0
        %613 = vmatpush1.bf16.xpose.msra.mxu0 %v610
        %614 = vmatprep.subr.bf16.mxu0 0
        %615 = vmatpush1.bf16.xpose.msra.mxu0 0
        %616 = vmatprep.subr.bf16.mxu0 0
        %617 = vmatpush1.bf16.xpose.msra.mxu0 0
        %618 = vmatprep.subr.bf16.mxu0 0
        %619 = vmatpush1.bf16.xpose.msra.mxu0 0
        %620 = vmatprep.subr.bf16.mxu0 0
        %621 = vmatpush1.bf16.xpose.msra.mxu0 0
        %622 = vmatprep.subr.bf16.mxu0 0
        %623 = vmatpush1.bf16.xpose.msra.mxu0 0
        %624 = vmatprep.subr.bf16.mxu0 0
        %625 = vmatpush1.bf16.xpose.msra.mxu0 0
        %626 = vmatprep.subr.bf16.mxu0 0
        %627 = vmatpush1.bf16.xpose.msra.mxu0 0
        %628 = vmatprep.subr.bf16.mxu0 0
        %629 = vmatpush1.bf16.xpose.msra.mxu0 0
        %630 = vmatprep.subr.bf16.mxu0 0
        %631 = vmatpush1.bf16.xpose.msra.mxu0 0
        %632 = vmatprep.subr.bf16.mxu0 0
        %633 = vmatpush1.bf16.xpose.msra.mxu0 0
        %634 = vmatprep.subr.bf16.mxu0 0
        %635 = vmatpush1.bf16.xpose.msra.mxu0 0
        %636 = vmatprep.subr.bf16.mxu0 0
        %637 = vmatpush1.bf16.xpose.msra.mxu0 0
        %638 = vmatprep.subr.bf16.mxu0 0
        %639 = vmatpush1.bf16.xpose.msra.mxu0 0
        %640 = vmatprep.subr.bf16.mxu0 0
        %641 = vmatpush1.bf16.xpose.msra.mxu0 0
        %642 = vmatprep.subr.bf16.mxu0 0
        %643 = vmatpush1.bf16.xpose.msra.mxu0 0
        %644 = vmatprep.mubr.bf16.mxu0 0
        %645 = vmatmul.mubr.bf16.gmra.mrb[0].mxu0 %v607
        %v646 = vpop.f32.mrb[0].mxu0
        %v647 = vadd.f32 %v500, %v646
        %v648 = vpop.f32.mrb[0].mxu0
        %v649 = vpop.f32.mrb[0].mxu0
        %v650 = vadd.f32 %v501, %v649
        %v651 = vpop.f32.mrb[0].mxu0
        %652 = vdwg.mxu0
        %654 = vrot.lane.b32.xlu0 %v499, 96
        %v655 = vpop.permute.xlu0 %654
        %v657 = vsel %vm505, %v499, 0
        %v660 = vsel %vm505, %v655, 0
        %662 = vmatprep.subr.bf16.mxu0 0
        %663 = vmatpush1.bf16.xpose.msra.mxu0 %v660
        %664 = vmatprep.subr.bf16.mxu0 0
        %665 = vmatpush1.bf16.xpose.msra.mxu0 0
        %666 = vmatprep.subr.bf16.mxu0 0
        %667 = vmatpush1.bf16.xpose.msra.mxu0 0
        %668 = vmatprep.subr.bf16.mxu0 0
        %669 = vmatpush1.bf16.xpose.msra.mxu0 0
        %670 = vmatprep.subr.bf16.mxu0 0
        %671 = vmatpush1.bf16.xpose.msra.mxu0 0
        %672 = vmatprep.subr.bf16.mxu0 0
        %673 = vmatpush1.bf16.xpose.msra.mxu0 0
        %674 = vmatprep.subr.bf16.mxu0 0
        %675 = vmatpush1.bf16.xpose.msra.mxu0 0
        %676 = vmatprep.subr.bf16.mxu0 0
        %677 = vmatpush1.bf16.xpose.msra.mxu0 0
        %678 = vmatprep.subr.bf16.mxu0 0
        %679 = vmatpush1.bf16.xpose.msra.mxu0 0
        %680 = vmatprep.subr.bf16.mxu0 0
        %681 = vmatpush1.bf16.xpose.msra.mxu0 0
        %682 = vmatprep.subr.bf16.mxu0 0
        %683 = vmatpush1.bf16.xpose.msra.mxu0 0
        %684 = vmatprep.subr.bf16.mxu0 0
        %685 = vmatpush1.bf16.xpose.msra.mxu0 0
        %686 = vmatprep.subr.bf16.mxu0 0
        %687 = vmatpush1.bf16.xpose.msra.mxu0 0
        %688 = vmatprep.subr.bf16.mxu0 0
        %689 = vmatpush1.bf16.xpose.msra.mxu0 0
        %690 = vmatprep.subr.bf16.mxu0 0
        %691 = vmatpush1.bf16.xpose.msra.mxu0 0
        %692 = vmatprep.subr.bf16.mxu0 0
        %693 = vmatpush1.bf16.xpose.msra.mxu0 0
        %694 = vmatprep.mubr.bf16.mxu0 0
        %695 = vmatmul.mubr.bf16.gmra.mrb[0].mxu0 %v657
        %v696 = vpop.f32.mrb[0].mxu0
        %v697 = vadd.f32 %v500, %v696
        %v698 = vpop.f32.mrb[0].mxu0
        %v699 = vpop.f32.mrb[0].mxu0
        %v700 = vadd.f32 %v501, %v699
        %v701 = vpop.f32.mrb[0].mxu0
        %702 = vdwg.mxu0
        %v703 = vadd.f32 %v547, %v488
        %v704 = vadd.f32 %v550, %v489
        %v705 = vadd.f32 %v597, %v490
        %v706 = vadd.f32 %v600, %v491
        %v707 = vadd.f32 %v647, %v492
        %v708 = vadd.f32 %v650, %v493
        %v709 = vadd.f32 %v697, %v494
        %v710 = vadd.f32 %v700, %v495
        %vm711 = vcmask 130048
        %v712 = vsel %vm711, %v703, -inf
        %713 = vmax.xlane.f32.xlu0 %v712
        %v714 = vpop.xlane.xlu0 %713
        %v715 = vsel %vm711, %v704, -inf
        %716 = vmax.xlane.f32.xlu0 %v715
        %v717 = vpop.xlane.xlu0 %716
        %v718 = vsel %vm711, %v705, -inf
        %719 = vmax.xlane.f32.xlu0 %v718
        %v720 = vpop.xlane.xlu0 %719
        %v721 = vsel %vm711, %v706, -inf
        %722 = vmax.xlane.f32.xlu0 %v721
        %v723 = vpop.xlane.xlu0 %722
        %v724 = vsel %vm711, %v707, -inf
        %725 = vmax.xlane.f32.xlu0 %v724
        %v726 = vpop.xlane.xlu0 %725
        %v727 = vsel %vm711, %v708, -inf
        %728 = vmax.xlane.f32.xlu0 %v727
        %v729 = vpop.xlane.xlu0 %728
        %v730 = vsel %vm711, %v709, -inf
        %731 = vmax.xlane.f32.xlu0 %v730
        %v732 = vpop.xlane.xlu0 %731
        %v733 = vsel %vm711, %v710, -inf
        %734 = vmax.xlane.f32.xlu0 %v733
        %v735 = vpop.xlane.xlu0 %734
        %v736 = vsub.f32 %v703, %v714
        %v737 = vsub.f32 %v704, %v717
        %v738 = vsub.f32 %v705, %v720
        %v739 = vsub.f32 %v706, %v723
        %v740 = vsub.f32 %v707, %v726
        %v741 = vsub.f32 %v708, %v729
        %v742 = vsub.f32 %v709, %v732
        %v743 = vsub.f32 %v710, %v735
        %v744 = vmul.f32 %v736, 1.442695
        %v745 = vpow.pop %v744
        %v746 = vmul.f32 %v737, 1.442695
        %v747 = vpow.pop %v746
        %v748 = vmul.f32 %v738, 1.442695
        %v749 = vpow.pop %v748
        %v750 = vmul.f32 %v739, 1.442695
        %v751 = vpow.pop %v750
        %v752 = vmul.f32 %v740, 1.442695
        %v753 = vpow.pop %v752
        %v754 = vmul.f32 %v741, 1.442695
        %v755 = vpow.pop %v754
        %v756 = vmul.f32 %v742, 1.442695
        %v757 = vpow.pop %v756
        %v758 = vmul.f32 %v743, 1.442695
        %v759 = vpow.pop %v758
        %v760 = vsel %vm711, %v745, 0.0
        %761 = vadd.xlane.f32.xlu0 %v760
        %v762 = vpop.xlane.xlu0 %761
        %v763 = vsel %vm711, %v747, 0.0
        %764 = vadd.xlane.f32.xlu0 %v763
        %v765 = vpop.xlane.xlu0 %764
        %v766 = vsel %vm711, %v749, 0.0
        %767 = vadd.xlane.f32.xlu0 %v766
        %v768 = vpop.xlane.xlu0 %767
        %v769 = vsel %vm711, %v751, 0.0
        %770 = vadd.xlane.f32.xlu0 %v769
        %v771 = vpop.xlane.xlu0 %770
        %v772 = vsel %vm711, %v753, 0.0
        %773 = vadd.xlane.f32.xlu0 %v772
        %v774 = vpop.xlane.xlu0 %773
        %v775 = vsel %vm711, %v755, 0.0
        %776 = vadd.xlane.f32.xlu0 %v775
        %v777 = vpop.xlane.xlu0 %776
        %v778 = vsel %vm711, %v757, 0.0
        %779 = vadd.xlane.f32.xlu0 %v778
        %v780 = vpop.xlane.xlu0 %779
        %v781 = vsel %vm711, %v759, 0.0
        %782 = vadd.xlane.f32.xlu0 %v781
        %v783 = vpop.xlane.xlu0 %782
        %v784 = vrcp.pop %v762
        %v785 = vrcp.pop %v765
        %v786 = vrcp.pop %v768
        %v787 = vrcp.pop %v771
        %v788 = vrcp.pop %v774
        %v789 = vrcp.pop %v777
        %v790 = vrcp.pop %v780
        %v791 = vrcp.pop %v783
        %v792 = vmul.f32 %v745, %v784
        %v793 = vmul.f32 %v747, %v785
        %v794 = vmul.f32 %v749, %v786
        %v795 = vmul.f32 %v751, %v787
        %v796 = vmul.f32 %v753, %v788
        %v797 = vmul.f32 %v755, %v789
        %v798 = vmul.f32 %v757, %v790
        %v799 = vmul.f32 %v759, %v791
        %v800 = vpack.c.bf16 %v793, %v792
        %v801 = vpack.c.bf16 %v795, %v794
        %v802 = vpack.c.bf16 %v797, %v796
        %v803 = vpack.c.bf16 %v799, %v798
        %804 = vrot.lane.b32.xlu0 %v496, 64
        %v805 = vpop.permute.xlu0 %804
        %v808 = vsel %vm711, %v800, 0
        %810 = vmatprep.subr.bf16.mxu0 0
        %811 = vmatpush1.bf16.msra.mxu0 %v805
        %812 = vmatprep.subr.bf16.mxu0 0
        %813 = vmatpush1.bf16.msra.mxu0 0
        %814 = vmatprep.subr.bf16.mxu0 0
        %815 = vmatpush1.bf16.msra.mxu0 0
        %816 = vmatprep.subr.bf16.mxu0 0
        %817 = vmatpush1.bf16.msra.mxu0 0
        %818 = vmatprep.subr.bf16.mxu0 0
        %819 = vmatpush1.bf16.msra.mxu0 0
        %820 = vmatprep.subr.bf16.mxu0 0
        %821 = vmatpush1.bf16.msra.mxu0 0
        %822 = vmatprep.subr.bf16.mxu0 0
        %823 = vmatpush1.bf16.msra.mxu0 0
        %824 = vmatprep.subr.bf16.mxu0 0
        %825 = vmatpush1.bf16.msra.mxu0 0
        %826 = vmatprep.subr.bf16.mxu0 0
        %827 = vmatpush1.bf16.msra.mxu0 0
        %828 = vmatprep.subr.bf16.mxu0 0
        %829 = vmatpush1.bf16.msra.mxu0 0
        %830 = vmatprep.subr.bf16.mxu0 0
        %831 = vmatpush1.bf16.msra.mxu0 0
        %832 = vmatprep.subr.bf16.mxu0 0
        %833 = vmatpush1.bf16.msra.mxu0 0
        %834 = vmatprep.subr.bf16.mxu0 0
        %835 = vmatpush1.bf16.msra.mxu0 0
        %836 = vmatprep.subr.bf16.mxu0 0
        %837 = vmatpush1.bf16.msra.mxu0 0
        %838 = vmatprep.subr.bf16.mxu0 0
        %839 = vmatpush1.bf16.msra.mxu0 0
        %840 = vmatprep.subr.bf16.mxu0 0
        %841 = vmatpush1.bf16.msra.mxu0 0
        %842 = vmatprep.mubr.bf16.mxu0 0
        %843 = vmatmul.mubr.bf16.gmra.mrb[0].mxu0 %v808
        %v844 = vpop.f32.mrb[0].mxu0
        %v845 = vadd.f32 0.0, %v844
        %v846 = vpop.f32.mrb[0].mxu0
        %v847 = vpop.f32.mrb[0].mxu0
        %v848 = vadd.f32 0.0, %v847
        %v849 = vpop.f32.mrb[0].mxu0
        %850 = vdwg.mxu0
        %851 = vrot.lane.b32.xlu0 %v497, 64
        %v852 = vpop.permute.xlu0 %851
        %v855 = vsel %vm711, %v801, 0
        %857 = vmatprep.subr.bf16.mxu0 0
        %858 = vmatpush1.bf16.msra.mxu0 %v852
        %859 = vmatprep.subr.bf16.mxu0 0
        %860 = vmatpush1.bf16.msra.mxu0 0
        %861 = vmatprep.subr.bf16.mxu0 0
        %862 = vmatpush1.bf16.msra.mxu0 0
        %863 = vmatprep.subr.bf16.mxu0 0
        %864 = vmatpush1.bf16.msra.mxu0 0
        %865 = vmatprep.subr.bf16.mxu0 0
        %866 = vmatpush1.bf16.msra.mxu0 0
        %867 = vmatprep.subr.bf16.mxu0 0
        %868 = vmatpush1.bf16.msra.mxu0 0
        %869 = vmatprep.subr.bf16.mxu0 0
        %870 = vmatpush1.bf16.msra.mxu0 0
        %871 = vmatprep.subr.bf16.mxu0 0
        %872 = vmatpush1.bf16.msra.mxu0 0
        %873 = vmatprep.subr.bf16.mxu0 0
        %874 = vmatpush1.bf16.msra.mxu0 0
        %875 = vmatprep.subr.bf16.mxu0 0
        %876 = vmatpush1.bf16.msra.mxu0 0
        %877 = vmatprep.subr.bf16.mxu0 0
        %878 = vmatpush1.bf16.msra.mxu0 0
        %879 = vmatprep.subr.bf16.mxu0 0
        %880 = vmatpush1.bf16.msra.mxu0 0
        %881 = vmatprep.subr.bf16.mxu0 0
        %882 = vmatpush1.bf16.msra.mxu0 0
        %883 = vmatprep.subr.bf16.mxu0 0
        %884 = vmatpush1.bf16.msra.mxu0 0
        %885 = vmatprep.subr.bf16.mxu0 0
        %886 = vmatpush1.bf16.msra.mxu0 0
        %887 = vmatprep.subr.bf16.mxu0 0
        %888 = vmatpush1.bf16.msra.mxu0 0
        %889 = vmatprep.mubr.bf16.mxu0 0
        %890 = vmatmul.mubr.bf16.gmra.mrb[0].mxu0 %v855
        %v891 = vpop.f32.mrb[0].mxu0
        %v892 = vadd.f32 0.0, %v891
        %v893 = vpop.f32.mrb[0].mxu0
        %v894 = vpop.f32.mrb[0].mxu0
        %v895 = vadd.f32 0.0, %v894
        %v896 = vpop.f32.mrb[0].mxu0
        %897 = vdwg.mxu0
        %898 = vrot.lane.b32.xlu0 %v498, 64
        %v899 = vpop.permute.xlu0 %898
        %v902 = vsel %vm711, %v802, 0
        %904 = vmatprep.subr.bf16.mxu0 0
        %905 = vmatpush1.bf16.msra.mxu0 %v899
        %906 = vmatprep.subr.bf16.mxu0 0
        %907 = vmatpush1.bf16.msra.mxu0 0
        %908 = vmatprep.subr.bf16.mxu0 0
        %909 = vmatpush1.bf16.msra.mxu0 0
        %910 = vmatprep.subr.bf16.mxu0 0
        %911 = vmatpush1.bf16.msra.mxu0 0
        %912 = vmatprep.subr.bf16.mxu0 0
        %913 = vmatpush1.bf16.msra.mxu0 0
        %914 = vmatprep.subr.bf16.mxu0 0
        %915 = vmatpush1.bf16.msra.mxu0 0
        %916 = vmatprep.subr.bf16.mxu0 0
        %917 = vmatpush1.bf16.msra.mxu0 0
        %918 = vmatprep.subr.bf16.mxu0 0
        %919 = vmatpush1.bf16.msra.mxu0 0
        %920 = vmatprep.subr.bf16.mxu0 0
        %921 = vmatpush1.bf16.msra.mxu0 0
        %922 = vmatprep.subr.bf16.mxu0 0
        %923 = vmatpush1.bf16.msra.mxu0 0
        %924 = vmatprep.subr.bf16.mxu0 0
        %925 = vmatpush1.bf16.msra.mxu0 0
        %926 = vmatprep.subr.bf16.mxu0 0
        %927 = vmatpush1.bf16.msra.mxu0 0
        %928 = vmatprep.subr.bf16.mxu0 0
        %929 = vmatpush1.bf16.msra.mxu0 0
        %930 = vmatprep.subr.bf16.mxu0 0
        %931 = vmatpush1.bf16.msra.mxu0 0
        %932 = vmatprep.subr.bf16.mxu0 0
        %933 = vmatpush1.bf16.msra.mxu0 0
        %934 = vmatprep.subr.bf16.mxu0 0
        %935 = vmatpush1.bf16.msra.mxu0 0
        %936 = vmatprep.mubr.bf16.mxu0 0
        %937 = vmatmul.mubr.bf16.gmra.mrb[0].mxu0 %v902
        %v938 = vpop.f32.mrb[0].mxu0
        %v939 = vadd.f32 0.0, %v938
        %v940 = vpop.f32.mrb[0].mxu0
        %v941 = vpop.f32.mrb[0].mxu0
        %v942 = vadd.f32 0.0, %v941
        %v943 = vpop.f32.mrb[0].mxu0
        %944 = vdwg.mxu0
        %945 = vrot.lane.b32.xlu0 %v499, 64
        %v946 = vpop.permute.xlu0 %945
        %v949 = vsel %vm711, %v803, 0
        %951 = vmatprep.subr.bf16.mxu0 0
        %952 = vmatpush1.bf16.msra.mxu0 %v946
        %953 = vmatprep.subr.bf16.mxu0 0
        %954 = vmatpush1.bf16.msra.mxu0 0
        %955 = vmatprep.subr.bf16.mxu0 0
        %956 = vmatpush1.bf16.msra.mxu0 0
        %957 = vmatprep.subr.bf16.mxu0 0
        %958 = vmatpush1.bf16.msra.mxu0 0
        %959 = vmatprep.subr.bf16.mxu0 0
        %960 = vmatpush1.bf16.msra.mxu0 0
        %961 = vmatprep.subr.bf16.mxu0 0
        %962 = vmatpush1.bf16.msra.mxu0 0
        %963 = vmatprep.subr.bf16.mxu0 0
        %964 = vmatpush1.bf16.msra.mxu0 0
        %965 = vmatprep.subr.bf16.mxu0 0
        %966 = vmatpush1.bf16.msra.mxu0 0
        %967 = vmatprep.subr.bf16.mxu0 0
        %968 = vmatpush1.bf16.msra.mxu0 0
        %969 = vmatprep.subr.bf16.mxu0 0
        %970 = vmatpush1.bf16.msra.mxu0 0
        %971 = vmatprep.subr.bf16.mxu0 0
        %972 = vmatpush1.bf16.msra.mxu0 0
        %973 = vmatprep.subr.bf16.mxu0 0
        %974 = vmatpush1.bf16.msra.mxu0 0
        %975 = vmatprep.subr.bf16.mxu0 0
        %976 = vmatpush1.bf16.msra.mxu0 0
        %977 = vmatprep.subr.bf16.mxu0 0
        %978 = vmatpush1.bf16.msra.mxu0 0
        %979 = vmatprep.subr.bf16.mxu0 0
        %980 = vmatpush1.bf16.msra.mxu0 0
        %981 = vmatprep.subr.bf16.mxu0 0
        %982 = vmatpush1.bf16.msra.mxu0 0
        %983 = vmatprep.mubr.bf16.mxu0 0
        %984 = vmatmul.mubr.bf16.gmra.mrb[0].mxu0 %v949
        %v985 = vpop.f32.mrb[0].mxu0
        %v986 = vadd.f32 0.0, %v985
        %v987 = vpop.f32.mrb[0].mxu0
        %v988 = vpop.f32.mrb[0].mxu0
        %v989 = vadd.f32 0.0, %v988
        %v990 = vpop.f32.mrb[0].mxu0
        %991 = vdwg.mxu0
        %s992 = scalar_lea.vmem [#allocation8], 16
        %v993 = vld [vmem:[%s992] sm:$0xff]
        %v994 = vld [vmem:[%s992 + $0x8] sm:$0xff]
        %995 = vrot.lane.b32.xlu0 %v496, 120
        %v996 = vpop.permute.xlu0 %995
        %997 = vrot.lane.b32.xlu0 %v496, 88
        %v998 = vpop.permute.xlu0 %997
        %v1000 = vsel %vm505, %v996, 0
        %v1003 = vsel %vm505, %v998, 0
        %1005 = vmatprep.subr.bf16.mxu0 0
        %1006 = vmatpush1.bf16.xpose.msra.mxu0 %v1003
        %1007 = vmatprep.subr.bf16.mxu0 0
        %1008 = vmatpush1.bf16.xpose.msra.mxu0 0
        %1009 = vmatprep.subr.bf16.mxu0 0
        %1010 = vmatpush1.bf16.xpose.msra.mxu0 0
        %1011 = vmatprep.subr.bf16.mxu0 0
        %1012 = vmatpush1.bf16.xpose.msra.mxu0 0
        %1013 = vmatprep.subr.bf16.mxu0 0
        %1014 = vmatpush1.bf16.xpose.msra.mxu0 0
        %1015 = vmatprep.subr.bf16.mxu0 0
        %1016 = vmatpush1.bf16.xpose.msra.mxu0 0
        %1017 = vmatprep.subr.bf16.mxu0 0
        %1018 = vmatpush1.bf16.xpose.msra.mxu0 0
        %1019 = vmatprep.subr.bf16.mxu0 0
        %1020 = vmatpush1.bf16.xpose.msra.mxu0 0
        %1021 = vmatprep.subr.bf16.mxu0 0
        %1022 = vmatpush1.bf16.xpose.msra.mxu0 0
        %1023 = vmatprep.subr.bf16.mxu0 0
        %1024 = vmatpush1.bf16.xpose.msra.mxu0 0
        %1025 = vmatprep.subr.bf16.mxu0 0
        %1026 = vmatpush1.bf16.xpose.msra.mxu0 0
        %1027 = vmatprep.subr.bf16.mxu0 0
        %1028 = vmatpush1.bf16.xpose.msra.mxu0 0
        %1029 = vmatprep.subr.bf16.mxu0 0
        %1030 = vmatpush1.bf16.xpose.msra.mxu0 0
        %1031 = vmatprep.subr.bf16.mxu0 0
        %1032 = vmatpush1.bf16.xpose.msra.mxu0 0
        %1033 = vmatprep.subr.bf16.mxu0 0
        %1034 = vmatpush1.bf16.xpose.msra.mxu0 0
        %1035 = vmatprep.subr.bf16.mxu0 0
        %1036 = vmatpush1.bf16.xpose.msra.mxu0 0
        %1037 = vmatprep.mubr.bf16.mxu0 0
        %1038 = vmatmul.mubr.bf16.gmra.mrb[0].mxu0 %v1000
        %v1039 = vpop.f32.mrb[0].mxu0
        %v1040 = vadd.f32 %v993, %v1039
        %v1041 = vpop.f32.mrb[0].mxu0
        %v1042 = vpop.f32.mrb[0].mxu0
        %v1043 = vadd.f32 %v994, %v1042
        %v1044 = vpop.f32.mrb[0].mxu0
        %1045 = vdwg.mxu0
        %1046 = vrot.lane.b32.xlu0 %v497, 120
        %v1047 = vpop.permute.xlu0 %1046
        %1048 = vrot.lane.b32.xlu0 %v497, 88
        %v1049 = vpop.permute.xlu0 %1048
        %v1051 = vsel %vm505, %v1047, 0
        %v1054 = vsel %vm505, %v1049, 0
        %1056 = vmatprep.subr.bf16.mxu0 0
        %1057 = vmatpush1.bf16.xpose.msra.mxu0 %v1054
        %1058 = vmatprep.subr.bf16.mxu0 0
        %1059 = vmatpush1.bf16.xpose.msra.mxu0 0
        %1060 = vmatprep.subr.bf16.mxu0 0
        %1061 = vmatpush1.bf16.xpose.msra.mxu0 0
        %1062 = vmatprep.subr.bf16.mxu0 0
        %1063 = vmatpush1.bf16.xpose.msra.mxu0 0
        %1064 = vmatprep.subr.bf16.mxu0 0
        %1065 = vmatpush1.bf16.xpose.msra.mxu0 0
        %1066 = vmatprep.subr.bf16.mxu0 0
        %1067 = vmatpush1.bf16.xpose.msra.mxu0 0
        %1068 = vmatprep.subr.bf16.mxu0 0
        %1069 = vmatpush1.bf16.xpose.msra.mxu0 0
        %1070 = vmatprep.subr.bf16.mxu0 0
        %1071 = vmatpush1.bf16.xpose.msra.mxu0 0
        %1072 = vmatprep.subr.bf16.mxu0 0
        %1073 = vmatpush1.bf16.xpose.msra.mxu0 0
        %1074 = vmatprep.subr.bf16.mxu0 0
        %1075 = vmatpush1.bf16.xpose.msra.mxu0 0
        %1076 = vmatprep.subr.bf16.mxu0 0
        %1077 = vmatpush1.bf16.xpose.msra.mxu0 0
        %1078 = vmatprep.subr.bf16.mxu0 0
        %1079 = vmatpush1.bf16.xpose.msra.mxu0 0
        %1080 = vmatprep.subr.bf16.mxu0 0
        %1081 = vmatpush1.bf16.xpose.msra.mxu0 0
        %1082 = vmatprep.subr.bf16.mxu0 0
        %1083 = vmatpush1.bf16.xpose.msra.mxu0 0
        %1084 = vmatprep.subr.bf16.mxu0 0
        %1085 = vmatpush1.bf16.xpose.msra.mxu0 0
        %1086 = vmatprep.subr.bf16.mxu0 0
        %1087 = vmatpush1.bf16.xpose.msra.mxu0 0
        %1088 = vmatprep.mubr.bf16.mxu0 0
        %1089 = vmatmul.mubr.bf16.gmra.mrb[0].mxu0 %v1051
        %v1090 = vpop.f32.mrb[0].mxu0
        %v1091 = vadd.f32 %v993, %v1090
        %v1092 = vpop.f32.mrb[0].mxu0
        %v1093 = vpop.f32.mrb[0].mxu0
        %v1094 = vadd.f32 %v994, %v1093
        %v1095 = vpop.f32.mrb[0].mxu0
        %1096 = vdwg.mxu0
        %1097 = vrot.lane.b32.xlu0 %v498, 120
        %v1098 = vpop.permute.xlu0 %1097
        %1099 = vrot.lane.b32.xlu0 %v498, 88
        %v1100 = vpop.permute.xlu0 %1099
        %v1102 = vsel %vm505, %v1098, 0
        %v1105 = vsel %vm505, %v1100, 0
        %1107 = vmatprep.subr.bf16.mxu0 0
        %1108 = vmatpush1.bf16.xpose.msra.mxu0 %v1105
        %1109 = vmatprep.subr.bf16.mxu0 0
        %1110 = vmatpush1.bf16.xpose.msra.mxu0 0
        %1111 = vmatprep.subr.bf16.mxu0 0
        %1112 = vmatpush1.bf16.xpose.msra.mxu0 0
        %1113 = vmatprep.subr.bf16.mxu0 0
        %1114 = vmatpush1.bf16.xpose.msra.mxu0 0
        %1115 = vmatprep.subr.bf16.mxu0 0
        %1116 = vmatpush1.bf16.xpose.msra.mxu0 0
        %1117 = vmatprep.subr.bf16.mxu0 0
        %1118 = vmatpush1.bf16.xpose.msra.mxu0 0
        %1119 = vmatprep.subr.bf16.mxu0 0
        %1120 = vmatpush1.bf16.xpose.msra.mxu0 0
        %1121 = vmatprep.subr.bf16.mxu0 0
        %1122 = vmatpush1.bf16.xpose.msra.mxu0 0
        %1123 = vmatprep.subr.bf16.mxu0 0
        %1124 = vmatpush1.bf16.xpose.msra.mxu0 0
        %1125 = vmatprep.subr.bf16.mxu0 0
        %1126 = vmatpush1.bf16.xpose.msra.mxu0 0
        %1127 = vmatprep.subr.bf16.mxu0 0
        %1128 = vmatpush1.bf16.xpose.msra.mxu0 0
        %1129 = vmatprep.subr.bf16.mxu0 0
        %1130 = vmatpush1.bf16.xpose.msra.mxu0 0
        %1131 = vmatprep.subr.bf16.mxu0 0
        %1132 = vmatpush1.bf16.xpose.msra.mxu0 0
        %1133 = vmatprep.subr.bf16.mxu0 0
        %1134 = vmatpush1.bf16.xpose.msra.mxu0 0
        %1135 = vmatprep.subr.bf16.mxu0 0
        %1136 = vmatpush1.bf16.xpose.msra.mxu0 0
        %1137 = vmatprep.subr.bf16.mxu0 0
        %1138 = vmatpush1.bf16.xpose.msra.mxu0 0
        %1139 = vmatprep.mubr.bf16.mxu0 0
        %1140 = vmatmul.mubr.bf16.gmra.mrb[0].mxu0 %v1102
        %v1141 = vpop.f32.mrb[0].mxu0
        %v1142 = vadd.f32 %v993, %v1141
        %v1143 = vpop.f32.mrb[0].mxu0
        %v1144 = vpop.f32.mrb[0].mxu0
        %v1145 = vadd.f32 %v994, %v1144
        %v1146 = vpop.f32.mrb[0].mxu0
        %1147 = vdwg.mxu0
        %1148 = vrot.lane.b32.xlu0 %v499, 120
        %v1149 = vpop.permute.xlu0 %1148
        %1150 = vrot.lane.b32.xlu0 %v499, 88
        %v1151 = vpop.permute.xlu0 %1150
        %v1153 = vsel %vm505, %v1149, 0
        %v1156 = vsel %vm505, %v1151, 0
        %1158 = vmatprep.subr.bf16.mxu0 0
        %1159 = vmatpush1.bf16.xpose.msra.mxu0 %v1156
        %1160 = vmatprep.subr.bf16.mxu0 0
        %1161 = vmatpush1.bf16.xpose.msra.mxu0 0
        %1162 = vmatprep.subr.bf16.mxu0 0
        %1163 = vmatpush1.bf16.xpose.msra.mxu0 0
        %1164 = vmatprep.subr.bf16.mxu0 0
        %1165 = vmatpush1.bf16.xpose.msra.mxu0 0
        %1166 = vmatprep.subr.bf16.mxu0 0
        %1167 = vmatpush1.bf16.xpose.msra.mxu0 0
        %1168 = vmatprep.subr.bf16.mxu0 0
        %1169 = vmatpush1.bf16.xpose.msra.mxu0 0
        %1170 = vmatprep.subr.bf16.mxu0 0
        %1171 = vmatpush1.bf16.xpose.msra.mxu0 0
        %1172 = vmatprep.subr.bf16.mxu0 0
        %1173 = vmatpush1.bf16.xpose.msra.mxu0 0
        %1174 = vmatprep.subr.bf16.mxu0 0
        %1175 = vmatpush1.bf16.xpose.msra.mxu0 0
        %1176 = vmatprep.subr.bf16.mxu0 0
        %1177 = vmatpush1.bf16.xpose.msra.mxu0 0
        %1178 = vmatprep.subr.bf16.mxu0 0
        %1179 = vmatpush1.bf16.xpose.msra.mxu0 0
        %1180 = vmatprep.subr.bf16.mxu0 0
        %1181 = vmatpush1.bf16.xpose.msra.mxu0 0
        %1182 = vmatprep.subr.bf16.mxu0 0
        %1183 = vmatpush1.bf16.xpose.msra.mxu0 0
        %1184 = vmatprep.subr.bf16.mxu0 0
        %1185 = vmatpush1.bf16.xpose.msra.mxu0 0
        %1186 = vmatprep.subr.bf16.mxu0 0
        %1187 = vmatpush1.bf16.xpose.msra.mxu0 0
        %1188 = vmatprep.subr.bf16.mxu0 0
        %1189 = vmatpush1.bf16.xpose.msra.mxu0 0
        %1190 = vmatprep.mubr.bf16.mxu0 0
        %1191 = vmatmul.mubr.bf16.gmra.mrb[0].mxu0 %v1153
        %v1192 = vpop.f32.mrb[0].mxu0
        %v1193 = vadd.f32 %v993, %v1192
        %v1194 = vpop.f32.mrb[0].mxu0
        %v1195 = vpop.f32.mrb[0].mxu0
        %v1196 = vadd.f32 %v994, %v1195
        %v1197 = vpop.f32.mrb[0].mxu0
        %1198 = vdwg.mxu0
        %v1199 = vadd.f32 %v1040, %v488
        %v1200 = vadd.f32 %v1043, %v489
        %v1201 = vadd.f32 %v1091, %v490
        %v1202 = vadd.f32 %v1094, %v491
        %v1203 = vadd.f32 %v1142, %v492
        %v1204 = vadd.f32 %v1145, %v493
        %v1205 = vadd.f32 %v1193, %v494
        %v1206 = vadd.f32 %v1196, %v495
        %v1207 = vsel %vm711, %v1199, -inf
        %1208 = vmax.xlane.f32.xlu0 %v1207
        %v1209 = vpop.xlane.xlu0 %1208
        %v1210 = vsel %vm711, %v1200, -inf
        %1211 = vmax.xlane.f32.xlu0 %v1210
        %v1212 = vpop.xlane.xlu0 %1211
        %v1213 = vsel %vm711, %v1201, -inf
        %1214 = vmax.xlane.f32.xlu0 %v1213
        %v1215 = vpop.xlane.xlu0 %1214
        %v1216 = vsel %vm711, %v1202, -inf
        %1217 = vmax.xlane.f32.xlu0 %v1216
        %v1218 = vpop.xlane.xlu0 %1217
        %v1219 = vsel %vm711, %v1203, -inf
        %1220 = vmax.xlane.f32.xlu0 %v1219
        %v1221 = vpop.xlane.xlu0 %1220
        %v1222 = vsel %vm711, %v1204, -inf
        %1223 = vmax.xlane.f32.xlu0 %v1222
        %v1224 = vpop.xlane.xlu0 %1223
        %v1225 = vsel %vm711, %v1205, -inf
        %1226 = vmax.xlane.f32.xlu0 %v1225
        %v1227 = vpop.xlane.xlu0 %1226
        %v1228 = vsel %vm711, %v1206, -inf
        %1229 = vmax.xlane.f32.xlu0 %v1228
        %v1230 = vpop.xlane.xlu0 %1229
        %v1231 = vsub.f32 %v1199, %v1209
        %v1232 = vsub.f32 %v1200, %v1212
        %v1233 = vsub.f32 %v1201, %v1215
        %v1234 = vsub.f32 %v1202, %v1218
        %v1235 = vsub.f32 %v1203, %v1221
        %v1236 = vsub.f32 %v1204, %v1224
        %v1237 = vsub.f32 %v1205, %v1227
        %v1238 = vsub.f32 %v1206, %v1230
        %v1239 = vmul.f32 %v1231, 1.442695
        %v1240 = vpow.pop %v1239
        %v1241 = vmul.f32 %v1232, 1.442695
        %v1242 = vpow.pop %v1241
        %v1243 = vmul.f32 %v1233, 1.442695
        %v1244 = vpow.pop %v1243
        %v1245 = vmul.f32 %v1234, 1.442695
        %v1246 = vpow.pop %v1245
        %v1247 = vmul.f32 %v1235, 1.442695
        %v1248 = vpow.pop %v1247
        %v1249 = vmul.f32 %v1236, 1.442695
        %v1250 = vpow.pop %v1249
        %v1251 = vmul.f32 %v1237, 1.442695
        %v1252 = vpow.pop %v1251
        %v1253 = vmul.f32 %v1238, 1.442695
        %v1254 = vpow.pop %v1253
        %v1255 = vsel %vm711, %v1240, 0.0
        %1256 = vadd.xlane.f32.xlu0 %v1255
        %v1257 = vpop.xlane.xlu0 %1256
        %v1258 = vsel %vm711, %v1242, 0.0
        %1259 = vadd.xlane.f32.xlu0 %v1258
        %v1260 = vpop.xlane.xlu0 %1259
        %v1261 = vsel %vm711, %v1244, 0.0
        %1262 = vadd.xlane.f32.xlu0 %v1261
        %v1263 = vpop.xlane.xlu0 %1262
        %v1264 = vsel %vm711, %v1246, 0.0
        %1265 = vadd.xlane.f32.xlu0 %v1264
        %v1266 = vpop.xlane.xlu0 %1265
        %v1267 = vsel %vm711, %v1248, 0.0
        %1268 = vadd.xlane.f32.xlu0 %v1267
        %v1269 = vpop.xlane.xlu0 %1268
        %v1270 = vsel %vm711, %v1250, 0.0
        %1271 = vadd.xlane.f32.xlu0 %v1270
        %v1272 = vpop.xlane.xlu0 %1271
        %v1273 = vsel %vm711, %v1252, 0.0
        %1274 = vadd.xlane.f32.xlu0 %v1273
        %v1275 = vpop.xlane.xlu0 %1274
        %v1276 = vsel %vm711, %v1254, 0.0
        %1277 = vadd.xlane.f32.xlu0 %v1276
        %v1278 = vpop.xlane.xlu0 %1277
        %v1279 = vrcp.pop %v1257
        %v1280 = vrcp.pop %v1260
        %v1281 = vrcp.pop %v1263
        %v1282 = vrcp.pop %v1266
        %v1283 = vrcp.pop %v1269
        %v1284 = vrcp.pop %v1272
        %v1285 = vrcp.pop %v1275
        %v1286 = vrcp.pop %v1278
        %v1287 = vmul.f32 %v1240, %v1279
        %v1288 = vmul.f32 %v1242, %v1280
        %v1289 = vmul.f32 %v1244, %v1281
        %v1290 = vmul.f32 %v1246, %v1282
        %v1291 = vmul.f32 %v1248, %v1283
        %v1292 = vmul.f32 %v1250, %v1284
        %v1293 = vmul.f32 %v1252, %v1285
        %v1294 = vmul.f32 %v1254, %v1286
        %v1295 = vpack.c.bf16 %v1288, %v1287
        %v1296 = vpack.c.bf16 %v1290, %v1289
        %v1297 = vpack.c.bf16 %v1292, %v1291
        %v1298 = vpack.c.bf16 %v1294, %v1293
        %1299 = vrot.lane.b32.xlu0 %v496, 56
        %v1300 = vpop.permute.xlu0 %1299
        %v1303 = vsel %vm711, %v1295, 0
        %1305 = vmatprep.subr.bf16.mxu0 0
        %1306 = vmatpush1.bf16.msra.mxu0 %v1300
        %1307 = vmatprep.subr.bf16.mxu0 0
        %1308 = vmatpush1.bf16.msra.mxu0 0
        %1309 = vmatprep.subr.bf16.mxu0 0
        %1310 = vmatpush1.bf16.msra.mxu0 0
        %1311 = vmatprep.subr.bf16.mxu0 0
        %1312 = vmatpush1.bf16.msra.mxu0 0
        %1313 = vmatprep.subr.bf16.mxu0 0
        %1314 = vmatpush1.bf16.msra.mxu0 0
        %1315 = vmatprep.subr.bf16.mxu0 0
        %1316 = vmatpush1.bf16.msra.mxu0 0
        %1317 = vmatprep.subr.bf16.mxu0 0
        %1318 = vmatpush1.bf16.msra.mxu0 0
        %1319 = vmatprep.subr.bf16.mxu0 0
        %1320 = vmatpush1.bf16.msra.mxu0 0
        %1321 = vmatprep.subr.bf16.mxu0 0
        %1322 = vmatpush1.bf16.msra.mxu0 0
        %1323 = vmatprep.subr.bf16.mxu0 0
        %1324 = vmatpush1.bf16.msra.mxu0 0
        %1325 = vmatprep.subr.bf16.mxu0 0
        %1326 = vmatpush1.bf16.msra.mxu0 0
        %1327 = vmatprep.subr.bf16.mxu0 0
        %1328 = vmatpush1.bf16.msra.mxu0 0
        %1329 = vmatprep.subr.bf16.mxu0 0
        %1330 = vmatpush1.bf16.msra.mxu0 0
        %1331 = vmatprep.subr.bf16.mxu0 0
        %1332 = vmatpush1.bf16.msra.mxu0 0
        %1333 = vmatprep.subr.bf16.mxu0 0
        %1334 = vmatpush1.bf16.msra.mxu0 0
        %1335 = vmatprep.subr.bf16.mxu0 0
        %1336 = vmatpush1.bf16.msra.mxu0 0
        %1337 = vmatprep.mubr.bf16.mxu0 0
        %1338 = vmatmul.mubr.bf16.gmra.mrb[0].mxu0 %v1303
        %v1339 = vpop.f32.mrb[0].mxu0
        %v1340 = vadd.f32 0.0, %v1339
        %v1341 = vpop.f32.mrb[0].mxu0
        %v1342 = vpop.f32.mrb[0].mxu0
        %v1343 = vadd.f32 0.0, %v1342
        %v1344 = vpop.f32.mrb[0].mxu0
        %1345 = vdwg.mxu0
        %1346 = vrot.lane.b32.xlu0 %v497, 56
        %v1347 = vpop.permute.xlu0 %1346
        %v1350 = vsel %vm711, %v1296, 0
        %1352 = vmatprep.subr.bf16.mxu0 0
        %1353 = vmatpush1.bf16.msra.mxu0 %v1347
        %1354 = vmatprep.subr.bf16.mxu0 0
        %1355 = vmatpush1.bf16.msra.mxu0 0
        %1356 = vmatprep.subr.bf16.mxu0 0
        %1357 = vmatpush1.bf16.msra.mxu0 0
        %1358 = vmatprep.subr.bf16.mxu0 0
        %1359 = vmatpush1.bf16.msra.mxu0 0
        %1360 = vmatprep.subr.bf16.mxu0 0
        %1361 = vmatpush1.bf16.msra.mxu0 0
        %1362 = vmatprep.subr.bf16.mxu0 0
        %1363 = vmatpush1.bf16.msra.mxu0 0
        %1364 = vmatprep.subr.bf16.mxu0 0
        %1365 = vmatpush1.bf16.msra.mxu0 0
        %1366 = vmatprep.subr.bf16.mxu0 0
        %1367 = vmatpush1.bf16.msra.mxu0 0
        %1368 = vmatprep.subr.bf16.mxu0 0
        %1369 = vmatpush1.bf16.msra.mxu0 0
        %1370 = vmatprep.subr.bf16.mxu0 0
        %1371 = vmatpush1.bf16.msra.mxu0 0
        %1372 = vmatprep.subr.bf16.mxu0 0
        %1373 = vmatpush1.bf16.msra.mxu0 0
        %1374 = vmatprep.subr.bf16.mxu0 0
        %1375 = vmatpush1.bf16.msra.mxu0 0
        %1376 = vmatprep.subr.bf16.mxu0 0
        %1377 = vmatpush1.bf16.msra.mxu0 0
        %1378 = vmatprep.subr.bf16.mxu0 0
        %1379 = vmatpush1.bf16.msra.mxu0 0
        %1380 = vmatprep.subr.bf16.mxu0 0
        %1381 = vmatpush1.bf16.msra.mxu0 0
        %1382 = vmatprep.subr.bf16.mxu0 0
        %1383 = vmatpush1.bf16.msra.mxu0 0
        %1384 = vmatprep.mubr.bf16.mxu0 0
        %1385 = vmatmul.mubr.bf16.gmra.mrb[0].mxu0 %v1350
        %v1386 = vpop.f32.mrb[0].mxu0
        %v1387 = vadd.f32 0.0, %v1386
        %v1388 = vpop.f32.mrb[0].mxu0
        %v1389 = vpop.f32.mrb[0].mxu0
        %v1390 = vadd.f32 0.0, %v1389
        %v1391 = vpop.f32.mrb[0].mxu0
        %1392 = vdwg.mxu0
        %1393 = vrot.lane.b32.xlu0 %v498, 56
        %v1394 = vpop.permute.xlu0 %1393
        %v1397 = vsel %vm711, %v1297, 0
        %1399 = vmatprep.subr.bf16.mxu0 0
        %1400 = vmatpush1.bf16.msra.mxu0 %v1394
        %1401 = vmatprep.subr.bf16.mxu0 0
        %1402 = vmatpush1.bf16.msra.mxu0 0
        %1403 = vmatprep.subr.bf16.mxu0 0
        %1404 = vmatpush1.bf16.msra.mxu0 0
        %1405 = vmatprep.subr.bf16.mxu0 0
        %1406 = vmatpush1.bf16.msra.mxu0 0
        %1407 = vmatprep.subr.bf16.mxu0 0
        %1408 = vmatpush1.bf16.msra.mxu0 0
        %1409 = vmatprep.subr.bf16.mxu0 0
        %1410 = vmatpush1.bf16.msra.mxu0 0
        %1411 = vmatprep.subr.bf16.mxu0 0
        %1412 = vmatpush1.bf16.msra.mxu0 0
        %1413 = vmatprep.subr.bf16.mxu0 0
        %1414 = vmatpush1.bf16.msra.mxu0 0
        %1415 = vmatprep.subr.bf16.mxu0 0
        %1416 = vmatpush1.bf16.msra.mxu0 0
        %1417 = vmatprep.subr.bf16.mxu0 0
        %1418 = vmatpush1.bf16.msra.mxu0 0
        %1419 = vmatprep.subr.bf16.mxu0 0
        %1420 = vmatpush1.bf16.msra.mxu0 0
        %1421 = vmatprep.subr.bf16.mxu0 0
        %1422 = vmatpush1.bf16.msra.mxu0 0
        %1423 = vmatprep.subr.bf16.mxu0 0
        %1424 = vmatpush1.bf16.msra.mxu0 0
        %1425 = vmatprep.subr.bf16.mxu0 0
        %1426 = vmatpush1.bf16.msra.mxu0 0
        %1427 = vmatprep.subr.bf16.mxu0 0
        %1428 = vmatpush1.bf16.msra.mxu0 0
        %1429 = vmatprep.subr.bf16.mxu0 0
        %1430 = vmatpush1.bf16.msra.mxu0 0
        %1431 = vmatprep.mubr.bf16.mxu0 0
        %1432 = vmatmul.mubr.bf16.gmra.mrb[0].mxu0 %v1397
        %v1433 = vpop.f32.mrb[0].mxu0
        %v1434 = vadd.f32 0.0, %v1433
        %v1435 = vpop.f32.mrb[0].mxu0
        %v1436 = vpop.f32.mrb[0].mxu0
        %v1437 = vadd.f32 0.0, %v1436
        %v1438 = vpop.f32.mrb[0].mxu0
        %1439 = vdwg.mxu0
        %1440 = vrot.lane.b32.xlu0 %v499, 56
        %v1441 = vpop.permute.xlu0 %1440
        %v1444 = vsel %vm711, %v1298, 0
        %1446 = vmatprep.subr.bf16.mxu0 0
        %1447 = vmatpush1.bf16.msra.mxu0 %v1441
        %1448 = vmatprep.subr.bf16.mxu0 0
        %1449 = vmatpush1.bf16.msra.mxu0 0
        %1450 = vmatprep.subr.bf16.mxu0 0
        %1451 = vmatpush1.bf16.msra.mxu0 0
        %1452 = vmatprep.subr.bf16.mxu0 0
        %1453 = vmatpush1.bf16.msra.mxu0 0
        %1454 = vmatprep.subr.bf16.mxu0 0
        %1455 = vmatpush1.bf16.msra.mxu0 0
        %1456 = vmatprep.subr.bf16.mxu0 0
        %1457 = vmatpush1.bf16.msra.mxu0 0
        %1458 = vmatprep.subr.bf16.mxu0 0
        %1459 = vmatpush1.bf16.msra.mxu0 0
        %1460 = vmatprep.subr.bf16.mxu0 0
        %1461 = vmatpush1.bf16.msra.mxu0 0
        %1462 = vmatprep.subr.bf16.mxu0 0
        %1463 = vmatpush1.bf16.msra.mxu0 0
        %1464 = vmatprep.subr.bf16.mxu0 0
        %1465 = vmatpush1.bf16.msra.mxu0 0
        %1466 = vmatprep.subr.bf16.mxu0 0
        %1467 = vmatpush1.bf16.msra.mxu0 0
        %1468 = vmatprep.subr.bf16.mxu0 0
        %1469 = vmatpush1.bf16.msra.mxu0 0
        %1470 = vmatprep.subr.bf16.mxu0 0
        %1471 = vmatpush1.bf16.msra.mxu0 0
        %1472 = vmatprep.subr.bf16.mxu0 0
        %1473 = vmatpush1.bf16.msra.mxu0 0
        %1474 = vmatprep.subr.bf16.mxu0 0
        %1475 = vmatpush1.bf16.msra.mxu0 0
        %1476 = vmatprep.subr.bf16.mxu0 0
        %1477 = vmatpush1.bf16.msra.mxu0 0
        %1478 = vmatprep.mubr.bf16.mxu0 0
        %1479 = vmatmul.mubr.bf16.gmra.mrb[0].mxu0 %v1444
        %v1480 = vpop.f32.mrb[0].mxu0
        %v1481 = vadd.f32 0.0, %v1480
        %v1482 = vpop.f32.mrb[0].mxu0
        %v1483 = vpop.f32.mrb[0].mxu0
        %v1484 = vadd.f32 0.0, %v1483
        %v1485 = vpop.f32.mrb[0].mxu0
        %1486 = vdwg.mxu0
        %s1487 = scalar_lea.vmem [#allocation8], 32
        %v1488 = vld [vmem:[%s1487] sm:$0xff]
        %v1489 = vld [vmem:[%s1487 + $0x8] sm:$0xff]
        %1490 = vrot.lane.b32.xlu0 %v496, 112
        %v1491 = vpop.permute.xlu0 %1490
        %1492 = vrot.lane.b32.xlu0 %v496, 80
        %v1493 = vpop.permute.xlu0 %1492
        %v1495 = vsel %vm505, %v1491, 0
        %v1498 = vsel %vm505, %v1493, 0
        %1500 = vmatprep.subr.bf16.mxu0 0
        %1501 = vmatpush1.bf16.xpose.msra.mxu0 %v1498
        %1502 = vmatprep.subr.bf16.mxu0 0
        %1503 = vmatpush1.bf16.xpose.msra.mxu0 0
        %1504 = vmatprep.subr.bf16.mxu0 0
        %1505 = vmatpush1.bf16.xpose.msra.mxu0 0
        %1506 = vmatprep.subr.bf16.mxu0 0
        %1507 = vmatpush1.bf16.xpose.msra.mxu0 0
        %1508 = vmatprep.subr.bf16.mxu0 0
        %1509 = vmatpush1.bf16.xpose.msra.mxu0 0
        %1510 = vmatprep.subr.bf16.mxu0 0
        %1511 = vmatpush1.bf16.xpose.msra.mxu0 0
        %1512 = vmatprep.subr.bf16.mxu0 0
        %1513 = vmatpush1.bf16.xpose.msra.mxu0 0
        %1514 = vmatprep.subr.bf16.mxu0 0
        %1515 = vmatpush1.bf16.xpose.msra.mxu0 0
        %1516 = vmatprep.subr.bf16.mxu0 0
        %1517 = vmatpush1.bf16.xpose.msra.mxu0 0
        %1518 = vmatprep.subr.bf16.mxu0 0
        %1519 = vmatpush1.bf16.xpose.msra.mxu0 0
        %1520 = vmatprep.subr.bf16.mxu0 0
        %1521 = vmatpush1.bf16.xpose.msra.mxu0 0
        %1522 = vmatprep.subr.bf16.mxu0 0
        %1523 = vmatpush1.bf16.xpose.msra.mxu0 0
        %1524 = vmatprep.subr.bf16.mxu0 0
        %1525 = vmatpush1.bf16.xpose.msra.mxu0 0
        %1526 = vmatprep.subr.bf16.mxu0 0
        %1527 = vmatpush1.bf16.xpose.msra.mxu0 0
        %1528 = vmatprep.subr.bf16.mxu0 0
        %1529 = vmatpush1.bf16.xpose.msra.mxu0 0
        %1530 = vmatprep.subr.bf16.mxu0 0
        %1531 = vmatpush1.bf16.xpose.msra.mxu0 0
        %1532 = vmatprep.mubr.bf16.mxu0 0
        %1533 = vmatmul.mubr.bf16.gmra.mrb[0].mxu0 %v1495
        %v1534 = vpop.f32.mrb[0].mxu0
        %v1535 = vadd.f32 %v1488, %v1534
        %v1536 = vpop.f32.mrb[0].mxu0
        %v1537 = vpop.f32.mrb[0].mxu0
        %v1538 = vadd.f32 %v1489, %v1537
        %v1539 = vpop.f32.mrb[0].mxu0
        %1540 = vdwg.mxu0
        %1541 = vrot.lane.b32.xlu0 %v497, 112
        %v1542 = vpop.permute.xlu0 %1541
        %1543 = vrot.lane.b32.xlu0 %v497, 80
        %v1544 = vpop.permute.xlu0 %1543
        %v1546 = vsel %vm505, %v1542, 0
        %v1549 = vsel %vm505, %v1544, 0
        %1551 = vmatprep.subr.bf16.mxu0 0
        %1552 = vmatpush1.bf16.xpose.msra.mxu0 %v1549
        %1553 = vmatprep.subr.bf16.mxu0 0
        %1554 = vmatpush1.bf16.xpose.msra.mxu0 0
        %1555 = vmatprep.subr.bf16.mxu0 0
        %1556 = vmatpush1.bf16.xpose.msra.mxu0 0
        %1557 = vmatprep.subr.bf16.mxu0 0
        %1558 = vmatpush1.bf16.xpose.msra.mxu0 0
        %1559 = vmatprep.subr.bf16.mxu0 0
        %1560 = vmatpush1.bf16.xpose.msra.mxu0 0
        %1561 = vmatprep.subr.bf16.mxu0 0
        %1562 = vmatpush1.bf16.xpose.msra.mxu0 0
        %1563 = vmatprep.subr.bf16.mxu0 0
        %1564 = vmatpush1.bf16.xpose.msra.mxu0 0
        %1565 = vmatprep.subr.bf16.mxu0 0
        %1566 = vmatpush1.bf16.xpose.msra.mxu0 0
        %1567 = vmatprep.subr.bf16.mxu0 0
        %1568 = vmatpush1.bf16.xpose.msra.mxu0 0
        %1569 = vmatprep.subr.bf16.mxu0 0
        %1570 = vmatpush1.bf16.xpose.msra.mxu0 0
        %1571 = vmatprep.subr.bf16.mxu0 0
        %1572 = vmatpush1.bf16.xpose.msra.mxu0 0
        %1573 = vmatprep.subr.bf16.mxu0 0
        %1574 = vmatpush1.bf16.xpose.msra.mxu0 0
        %1575 = vmatprep.subr.bf16.mxu0 0
        %1576 = vmatpush1.bf16.xpose.msra.mxu0 0
        %1577 = vmatprep.subr.bf16.mxu0 0
        %1578 = vmatpush1.bf16.xpose.msra.mxu0 0
        %1579 = vmatprep.subr.bf16.mxu0 0
        %1580 = vmatpush1.bf16.xpose.msra.mxu0 0
        %1581 = vmatprep.subr.bf16.mxu0 0
        %1582 = vmatpush1.bf16.xpose.msra.mxu0 0
        %1583 = vmatprep.mubr.bf16.mxu0 0
        %1584 = vmatmul.mubr.bf16.gmra.mrb[0].mxu0 %v1546
        %v1585 = vpop.f32.mrb[0].mxu0
        %v1586 = vadd.f32 %v1488, %v1585
        %v1587 = vpop.f32.mrb[0].mxu0
        %v1588 = vpop.f32.mrb[0].mxu0
        %v1589 = vadd.f32 %v1489, %v1588
        %v1590 = vpop.f32.mrb[0].mxu0
        %1591 = vdwg.mxu0
        %1592 = vrot.lane.b32.xlu0 %v498, 112
        %v1593 = vpop.permute.xlu0 %1592
        %1594 = vrot.lane.b32.xlu0 %v498, 80
        %v1595 = vpop.permute.xlu0 %1594
        %v1597 = vsel %vm505, %v1593, 0
        %v1600 = vsel %vm505, %v1595, 0
        %1602 = vmatprep.subr.bf16.mxu0 0
        %1603 = vmatpush1.bf16.xpose.msra.mxu0 %v1600
        %1604 = vmatprep.subr.bf16.mxu0 0
        %1605 = vmatpush1.bf16.xpose.msra.mxu0 0
        %1606 = vmatprep.subr.bf16.mxu0 0
        %1607 = vmatpush1.bf16.xpose.msra.mxu0 0
        %1608 = vmatprep.subr.bf16.mxu0 0
        %1609 = vmatpush1.bf16.xpose.msra.mxu0 0
        %1610 = vmatprep.subr.bf16.mxu0 0
        %1611 = vmatpush1.bf16.xpose.msra.mxu0 0
        %1612 = vmatprep.subr.bf16.mxu0 0
        %1613 = vmatpush1.bf16.xpose.msra.mxu0 0
        %1614 = vmatprep.subr.bf16.mxu0 0
        %1615 = vmatpush1.bf16.xpose.msra.mxu0 0
        %1616 = vmatprep.subr.bf16.mxu0 0
        %1617 = vmatpush1.bf16.xpose.msra.mxu0 0
        %1618 = vmatprep.subr.bf16.mxu0 0
        %1619 = vmatpush1.bf16.xpose.msra.mxu0 0
        %1620 = vmatprep.subr.bf16.mxu0 0
        %1621 = vmatpush1.bf16.xpose.msra.mxu0 0
        %1622 = vmatprep.subr.bf16.mxu0 0
        %1623 = vmatpush1.bf16.xpose.msra.mxu0 0
        %1624 = vmatprep.subr.bf16.mxu0 0
        %1625 = vmatpush1.bf16.xpose.msra.mxu0 0
        %1626 = vmatprep.subr.bf16.mxu0 0
        %1627 = vmatpush1.bf16.xpose.msra.mxu0 0
        %1628 = vmatprep.subr.bf16.mxu0 0
        %1629 = vmatpush1.bf16.xpose.msra.mxu0 0
        %1630 = vmatprep.subr.bf16.mxu0 0
        %1631 = vmatpush1.bf16.xpose.msra.mxu0 0
        %1632 = vmatprep.subr.bf16.mxu0 0
        %1633 = vmatpush1.bf16.xpose.msra.mxu0 0
        %1634 = vmatprep.mubr.bf16.mxu0 0
        %1635 = vmatmul.mubr.bf16.gmra.mrb[0].mxu0 %v1597
        %v1636 = vpop.f32.mrb[0].mxu0
        %v1637 = vadd.f32 %v1488, %v1636
        %v1638 = vpop.f32.mrb[0].mxu0
        %v1639 = vpop.f32.mrb[0].mxu0
        %v1640 = vadd.f32 %v1489, %v1639
        %v1641 = vpop.f32.mrb[0].mxu0
        %1642 = vdwg.mxu0
        %1643 = vrot.lane.b32.xlu0 %v499, 112
        %v1644 = vpop.permute.xlu0 %1643
        %1645 = vrot.lane.b32.xlu0 %v499, 80
        %v1646 = vpop.permute.xlu0 %1645
        %v1648 = vsel %vm505, %v1644, 0
        %v1651 = vsel %vm505, %v1646, 0
        %1653 = vmatprep.subr.bf16.mxu0 0
        %1654 = vmatpush1.bf16.xpose.msra.mxu0 %v1651
        %1655 = vmatprep.subr.bf16.mxu0 0
        %1656 = vmatpush1.bf16.xpose.msra.mxu0 0
        %1657 = vmatprep.subr.bf16.mxu0 0
        %1658 = vmatpush1.bf16.xpose.msra.mxu0 0
        %1659 = vmatprep.subr.bf16.mxu0 0
        %1660 = vmatpush1.bf16.xpose.msra.mxu0 0
        %1661 = vmatprep.subr.bf16.mxu0 0
        %1662 = vmatpush1.bf16.xpose.msra.mxu0 0
        %1663 = vmatprep.subr.bf16.mxu0 0
        %1664 = vmatpush1.bf16.xpose.msra.mxu0 0
        %1665 = vmatprep.subr.bf16.mxu0 0
        %1666 = vmatpush1.bf16.xpose.msra.mxu0 0
        %1667 = vmatprep.subr.bf16.mxu0 0
        %1668 = vmatpush1.bf16.xpose.msra.mxu0 0
        %1669 = vmatprep.subr.bf16.mxu0 0
        %1670 = vmatpush1.bf16.xpose.msra.mxu0 0
        %1671 = vmatprep.subr.bf16.mxu0 0
        %1672 = vmatpush1.bf16.xpose.msra.mxu0 0
        %1673 = vmatprep.subr.bf16.mxu0 0
        %1674 = vmatpush1.bf16.xpose.msra.mxu0 0
        %1675 = vmatprep.subr.bf16.mxu0 0
        %1676 = vmatpush1.bf16.xpose.msra.mxu0 0
        %1677 = vmatprep.subr.bf16.mxu0 0
        %1678 = vmatpush1.bf16.xpose.msra.mxu0 0
        %1679 = vmatprep.subr.bf16.mxu0 0
        %1680 = vmatpush1.bf16.xpose.msra.mxu0 0
        %1681 = vmatprep.subr.bf16.mxu0 0
        %1682 = vmatpush1.bf16.xpose.msra.mxu0 0
        %1683 = vmatprep.subr.bf16.mxu0 0
        %1684 = vmatpush1.bf16.xpose.msra.mxu0 0
        %1685 = vmatprep.mubr.bf16.mxu0 0
        %1686 = vmatmul.mubr.bf16.gmra.mrb[0].mxu0 %v1648
        %v1687 = vpop.f32.mrb[0].mxu0
        %v1688 = vadd.f32 %v1488, %v1687
        %v1689 = vpop.f32.mrb[0].mxu0
        %v1690 = vpop.f32.mrb[0].mxu0
        %v1691 = vadd.f32 %v1489, %v1690
        %v1692 = vpop.f32.mrb[0].mxu0
        %1693 = vdwg.mxu0
        %v1694 = vadd.f32 %v1535, %v488
        %v1695 = vadd.f32 %v1538, %v489
        %v1696 = vadd.f32 %v1586, %v490
        %v1697 = vadd.f32 %v1589, %v491
        %v1698 = vadd.f32 %v1637, %v492
        %v1699 = vadd.f32 %v1640, %v493
        %v1700 = vadd.f32 %v1688, %v494
        %v1701 = vadd.f32 %v1691, %v495
        %v1702 = vsel %vm711, %v1694, -inf
        %1703 = vmax.xlane.f32.xlu0 %v1702
        %v1704 = vpop.xlane.xlu0 %1703
        %v1705 = vsel %vm711, %v1695, -inf
        %1706 = vmax.xlane.f32.xlu0 %v1705
        %v1707 = vpop.xlane.xlu0 %1706
        %v1708 = vsel %vm711, %v1696, -inf
        %1709 = vmax.xlane.f32.xlu0 %v1708
        %v1710 = vpop.xlane.xlu0 %1709
        %v1711 = vsel %vm711, %v1697, -inf
        %1712 = vmax.xlane.f32.xlu0 %v1711
        %v1713 = vpop.xlane.xlu0 %1712
        %v1714 = vsel %vm711, %v1698, -inf
        %1715 = vmax.xlane.f32.xlu0 %v1714
        %v1716 = vpop.xlane.xlu0 %1715
        %v1717 = vsel %vm711, %v1699, -inf
        %1718 = vmax.xlane.f32.xlu0 %v1717
        %v1719 = vpop.xlane.xlu0 %1718
        %v1720 = vsel %vm711, %v1700, -inf
        %1721 = vmax.xlane.f32.xlu0 %v1720
        %v1722 = vpop.xlane.xlu0 %1721
        %v1723 = vsel %vm711, %v1701, -inf
        %1724 = vmax.xlane.f32.xlu0 %v1723
        %v1725 = vpop.xlane.xlu0 %1724
        %v1726 = vsub.f32 %v1694, %v1704
        %v1727 = vsub.f32 %v1695, %v1707
        %v1728 = vsub.f32 %v1696, %v1710
        %v1729 = vsub.f32 %v1697, %v1713
        %v1730 = vsub.f32 %v1698, %v1716
        %v1731 = vsub.f32 %v1699, %v1719
        %v1732 = vsub.f32 %v1700, %v1722
        %v1733 = vsub.f32 %v1701, %v1725
        %v1734 = vmul.f32 %v1726, 1.442695
        %v1735 = vpow.pop %v1734
        %v1736 = vmul.f32 %v1727, 1.442695
        %v1737 = vpow.pop %v1736
        %v1738 = vmul.f32 %v1728, 1.442695
        %v1739 = vpow.pop %v1738
        %v1740 = vmul.f32 %v1729, 1.442695
        %v1741 = vpow.pop %v1740
        %v1742 = vmul.f32 %v1730, 1.442695
        %v1743 = vpow.pop %v1742
        %v1744 = vmul.f32 %v1731, 1.442695
        %v1745 = vpow.pop %v1744
        %v1746 = vmul.f32 %v1732, 1.442695
        %v1747 = vpow.pop %v1746
        %v1748 = vmul.f32 %v1733, 1.442695
        %v1749 = vpow.pop %v1748
        %v1750 = vsel %vm711, %v1735, 0.0
        %1751 = vadd.xlane.f32.xlu0 %v1750
        %v1752 = vpop.xlane.xlu0 %1751
        %v1753 = vsel %vm711, %v1737, 0.0
        %1754 = vadd.xlane.f32.xlu0 %v1753
        %v1755 = vpop.xlane.xlu0 %1754
        %v1756 = vsel %vm711, %v1739, 0.0
        %1757 = vadd.xlane.f32.xlu0 %v1756
        %v1758 = vpop.xlane.xlu0 %1757
        %v1759 = vsel %vm711, %v1741, 0.0
        %1760 = vadd.xlane.f32.xlu0 %v1759
        %v1761 = vpop.xlane.xlu0 %1760
        %v1762 = vsel %vm711, %v1743, 0.0
        %1763 = vadd.xlane.f32.xlu0 %v1762
        %v1764 = vpop.xlane.xlu0 %1763
        %v1765 = vsel %vm711, %v1745, 0.0
        %1766 = vadd.xlane.f32.xlu0 %v1765
        %v1767 = vpop.xlane.xlu0 %1766
        %v1768 = vsel %vm711, %v1747, 0.0
        %1769 = vadd.xlane.f32.xlu0 %v1768
        %v1770 = vpop.xlane.xlu0 %1769
        %v1771 = vsel %vm711, %v1749, 0.0
        %1772 = vadd.xlane.f32.xlu0 %v1771
        %v1773 = vpop.xlane.xlu0 %1772
        %v1774 = vrcp.pop %v1752
        %v1775 = vrcp.pop %v1755
        %v1776 = vrcp.pop %v1758
        %v1777 = vrcp.pop %v1761
        %v1778 = vrcp.pop %v1764
        %v1779 = vrcp.pop %v1767
        %v1780 = vrcp.pop %v1770
        %v1781 = vrcp.pop %v1773
        %v1782 = vmul.f32 %v1735, %v1774
        %v1783 = vmul.f32 %v1737, %v1775
        %v1784 = vmul.f32 %v1739, %v1776
        %v1785 = vmul.f32 %v1741, %v1777
        %v1786 = vmul.f32 %v1743, %v1778
        %v1787 = vmul.f32 %v1745, %v1779
        %v1788 = vmul.f32 %v1747, %v1780
        %v1789 = vmul.f32 %v1749, %v1781
        %v1790 = vpack.c.bf16 %v1783, %v1782
        %v1791 = vpack.c.bf16 %v1785, %v1784
        %v1792 = vpack.c.bf16 %v1787, %v1786
        %v1793 = vpack.c.bf16 %v1789, %v1788
        %1794 = vrot.lane.b32.xlu0 %v496, 48
        %v1795 = vpop.permute.xlu0 %1794
        %v1798 = vsel %vm711, %v1790, 0
        %1800 = vmatprep.subr.bf16.mxu0 0
        %1801 = vmatpush1.bf16.msra.mxu0 %v1795
        %1802 = vmatprep.subr.bf16.mxu0 0
        %1803 = vmatpush1.bf16.msra.mxu0 0
        %1804 = vmatprep.subr.bf16.mxu0 0
        %1805 = vmatpush1.bf16.msra.mxu0 0
        %1806 = vmatprep.subr.bf16.mxu0 0
        %1807 = vmatpush1.bf16.msra.mxu0 0
        %1808 = vmatprep.subr.bf16.mxu0 0
        %1809 = vmatpush1.bf16.msra.mxu0 0
        %1810 = vmatprep.subr.bf16.mxu0 0
        %1811 = vmatpush1.bf16.msra.mxu0 0
        %1812 = vmatprep.subr.bf16.mxu0 0
        %1813 = vmatpush1.bf16.msra.mxu0 0
        %1814 = vmatprep.subr.bf16.mxu0 0
        %1815 = vmatpush1.bf16.msra.mxu0 0
        %1816 = vmatprep.subr.bf16.mxu0 0
        %1817 = vmatpush1.bf16.msra.mxu0 0
        %1818 = vmatprep.subr.bf16.mxu0 0
        %1819 = vmatpush1.bf16.msra.mxu0 0
        %1820 = vmatprep.subr.bf16.mxu0 0
        %1821 = vmatpush1.bf16.msra.mxu0 0
        %1822 = vmatprep.subr.bf16.mxu0 0
        %1823 = vmatpush1.bf16.msra.mxu0 0
        %1824 = vmatprep.subr.bf16.mxu0 0
        %1825 = vmatpush1.bf16.msra.mxu0 0
        %1826 = vmatprep.subr.bf16.mxu0 0
        %1827 = vmatpush1.bf16.msra.mxu0 0
        %1828 = vmatprep.subr.bf16.mxu0 0
        %1829 = vmatpush1.bf16.msra.mxu0 0
        %1830 = vmatprep.subr.bf16.mxu0 0
        %1831 = vmatpush1.bf16.msra.mxu0 0
        %1832 = vmatprep.mubr.bf16.mxu0 0
        %1833 = vmatmul.mubr.bf16.gmra.mrb[0].mxu0 %v1798
        %v1834 = vpop.f32.mrb[0].mxu0
        %v1835 = vadd.f32 0.0, %v1834
        %v1836 = vpop.f32.mrb[0].mxu0
        %v1837 = vpop.f32.mrb[0].mxu0
        %v1838 = vadd.f32 0.0, %v1837
        %v1839 = vpop.f32.mrb[0].mxu0
        %1840 = vdwg.mxu0
        %1841 = vrot.lane.b32.xlu0 %v497, 48
        %v1842 = vpop.permute.xlu0 %1841
        %v1845 = vsel %vm711, %v1791, 0
        %1847 = vmatprep.subr.bf16.mxu0 0
        %1848 = vmatpush1.bf16.msra.mxu0 %v1842
        %1849 = vmatprep.subr.bf16.mxu0 0
        %1850 = vmatpush1.bf16.msra.mxu0 0
        %1851 = vmatprep.subr.bf16.mxu0 0
        %1852 = vmatpush1.bf16.msra.mxu0 0
        %1853 = vmatprep.subr.bf16.mxu0 0
        %1854 = vmatpush1.bf16.msra.mxu0 0
        %1855 = vmatprep.subr.bf16.mxu0 0
        %1856 = vmatpush1.bf16.msra.mxu0 0
        %1857 = vmatprep.subr.bf16.mxu0 0
        %1858 = vmatpush1.bf16.msra.mxu0 0
        %1859 = vmatprep.subr.bf16.mxu0 0
        %1860 = vmatpush1.bf16.msra.mxu0 0
        %1861 = vmatprep.subr.bf16.mxu0 0
        %1862 = vmatpush1.bf16.msra.mxu0 0
        %1863 = vmatprep.subr.bf16.mxu0 0
        %1864 = vmatpush1.bf16.msra.mxu0 0
        %1865 = vmatprep.subr.bf16.mxu0 0
        %1866 = vmatpush1.bf16.msra.mxu0 0
        %1867 = vmatprep.subr.bf16.mxu0 0
        %1868 = vmatpush1.bf16.msra.mxu0 0
        %1869 = vmatprep.subr.bf16.mxu0 0
        %1870 = vmatpush1.bf16.msra.mxu0 0
        %1871 = vmatprep.subr.bf16.mxu0 0
        %1872 = vmatpush1.bf16.msra.mxu0 0
        %1873 = vmatprep.subr.bf16.mxu0 0
        %1874 = vmatpush1.bf16.msra.mxu0 0
        %1875 = vmatprep.subr.bf16.mxu0 0
        %1876 = vmatpush1.bf16.msra.mxu0 0
        %1877 = vmatprep.subr.bf16.mxu0 0
        %1878 = vmatpush1.bf16.msra.mxu0 0
        %1879 = vmatprep.mubr.bf16.mxu0 0
        %1880 = vmatmul.mubr.bf16.gmra.mrb[0].mxu0 %v1845
        %v1881 = vpop.f32.mrb[0].mxu0
        %v1882 = vadd.f32 0.0, %v1881
        %v1883 = vpop.f32.mrb[0].mxu0
        %v1884 = vpop.f32.mrb[0].mxu0
        %v1885 = vadd.f32 0.0, %v1884
        %v1886 = vpop.f32.mrb[0].mxu0
        %1887 = vdwg.mxu0
        %1888 = vrot.lane.b32.xlu0 %v498, 48
        %v1889 = vpop.permute.xlu0 %1888
        %v1892 = vsel %vm711, %v1792, 0
        %1894 = vmatprep.subr.bf16.mxu0 0
        %1895 = vmatpush1.bf16.msra.mxu0 %v1889
        %1896 = vmatprep.subr.bf16.mxu0 0
        %1897 = vmatpush1.bf16.msra.mxu0 0
        %1898 = vmatprep.subr.bf16.mxu0 0
        %1899 = vmatpush1.bf16.msra.mxu0 0
        %1900 = vmatprep.subr.bf16.mxu0 0
        %1901 = vmatpush1.bf16.msra.mxu0 0
        %1902 = vmatprep.subr.bf16.mxu0 0
        %1903 = vmatpush1.bf16.msra.mxu0 0
        %1904 = vmatprep.subr.bf16.mxu0 0
        %1905 = vmatpush1.bf16.msra.mxu0 0
        %1906 = vmatprep.subr.bf16.mxu0 0
        %1907 = vmatpush1.bf16.msra.mxu0 0
        %1908 = vmatprep.subr.bf16.mxu0 0
        %1909 = vmatpush1.bf16.msra.mxu0 0
        %1910 = vmatprep.subr.bf16.mxu0 0
        %1911 = vmatpush1.bf16.msra.mxu0 0
        %1912 = vmatprep.subr.bf16.mxu0 0
        %1913 = vmatpush1.bf16.msra.mxu0 0
        %1914 = vmatprep.subr.bf16.mxu0 0
        %1915 = vmatpush1.bf16.msra.mxu0 0
        %1916 = vmatprep.subr.bf16.mxu0 0
        %1917 = vmatpush1.bf16.msra.mxu0 0
        %1918 = vmatprep.subr.bf16.mxu0 0
        %1919 = vmatpush1.bf16.msra.mxu0 0
        %1920 = vmatprep.subr.bf16.mxu0 0
        %1921 = vmatpush1.bf16.msra.mxu0 0
        %1922 = vmatprep.subr.bf16.mxu0 0
        %1923 = vmatpush1.bf16.msra.mxu0 0
        %1924 = vmatprep.subr.bf16.mxu0 0
        %1925 = vmatpush1.bf16.msra.mxu0 0
        %1926 = vmatprep.mubr.bf16.mxu0 0
        %1927 = vmatmul.mubr.bf16.gmra.mrb[0].mxu0 %v1892
        %v1928 = vpop.f32.mrb[0].mxu0
        %v1929 = vadd.f32 0.0, %v1928
        %v1930 = vpop.f32.mrb[0].mxu0
        %v1931 = vpop.f32.mrb[0].mxu0
        %v1932 = vadd.f32 0.0, %v1931
        %v1933 = vpop.f32.mrb[0].mxu0
        %1934 = vdwg.mxu0
        %1935 = vrot.lane.b32.xlu0 %v499, 48
        %v1936 = vpop.permute.xlu0 %1935
        %v1939 = vsel %vm711, %v1793, 0
        %1941 = vmatprep.subr.bf16.mxu0 0
        %1942 = vmatpush1.bf16.msra.mxu0 %v1936
        %1943 = vmatprep.subr.bf16.mxu0 0
        %1944 = vmatpush1.bf16.msra.mxu0 0
        %1945 = vmatprep.subr.bf16.mxu0 0
        %1946 = vmatpush1.bf16.msra.mxu0 0
        %1947 = vmatprep.subr.bf16.mxu0 0
        %1948 = vmatpush1.bf16.msra.mxu0 0
        %1949 = vmatprep.subr.bf16.mxu0 0
        %1950 = vmatpush1.bf16.msra.mxu0 0
        %1951 = vmatprep.subr.bf16.mxu0 0
        %1952 = vmatpush1.bf16.msra.mxu0 0
        %1953 = vmatprep.subr.bf16.mxu0 0
        %1954 = vmatpush1.bf16.msra.mxu0 0
        %1955 = vmatprep.subr.bf16.mxu0 0
        %1956 = vmatpush1.bf16.msra.mxu0 0
        %1957 = vmatprep.subr.bf16.mxu0 0
        %1958 = vmatpush1.bf16.msra.mxu0 0
        %1959 = vmatprep.subr.bf16.mxu0 0
        %1960 = vmatpush1.bf16.msra.mxu0 0
        %1961 = vmatprep.subr.bf16.mxu0 0
        %1962 = vmatpush1.bf16.msra.mxu0 0
        %1963 = vmatprep.subr.bf16.mxu0 0
        %1964 = vmatpush1.bf16.msra.mxu0 0
        %1965 = vmatprep.subr.bf16.mxu0 0
        %1966 = vmatpush1.bf16.msra.mxu0 0
        %1967 = vmatprep.subr.bf16.mxu0 0
        %1968 = vmatpush1.bf16.msra.mxu0 0
        %1969 = vmatprep.subr.bf16.mxu0 0
        %1970 = vmatpush1.bf16.msra.mxu0 0
        %1971 = vmatprep.subr.bf16.mxu0 0
        %1972 = vmatpush1.bf16.msra.mxu0 0
        %1973 = vmatprep.mubr.bf16.mxu0 0
        %1974 = vmatmul.mubr.bf16.gmra.mrb[0].mxu0 %v1939
        %v1975 = vpop.f32.mrb[0].mxu0
        %v1976 = vadd.f32 0.0, %v1975
        %v1977 = vpop.f32.mrb[0].mxu0
        %v1978 = vpop.f32.mrb[0].mxu0
        %v1979 = vadd.f32 0.0, %v1978
        %v1980 = vpop.f32.mrb[0].mxu0
        %1981 = vdwg.mxu0
        %s1982 = scalar_lea.vmem [#allocation8], 48
        %v1983 = vld [vmem:[%s1982] sm:$0xff]
        %v1984 = vld [vmem:[%s1982 + $0x8] sm:$0xff]
        %1985 = vrot.lane.b32.xlu0 %v496, 104
        %v1986 = vpop.permute.xlu0 %1985
        %1987 = vrot.lane.b32.xlu0 %v496, 72
        %v1988 = vpop.permute.xlu0 %1987
        %v1990 = vsel %vm505, %v1986, 0
        %v1993 = vsel %vm505, %v1988, 0
        %1995 = vmatprep.subr.bf16.mxu0 0
        %1996 = vmatpush1.bf16.xpose.msra.mxu0 %v1993
        %1997 = vmatprep.subr.bf16.mxu0 0
        %1998 = vmatpush1.bf16.xpose.msra.mxu0 0
        %1999 = vmatprep.subr.bf16.mxu0 0
        %2000 = vmatpush1.bf16.xpose.msra.mxu0 0
        %2001 = vmatprep.subr.bf16.mxu0 0
        %2002 = vmatpush1.bf16.xpose.msra.mxu0 0
        %2003 = vmatprep.subr.bf16.mxu0 0
        %2004 = vmatpush1.bf16.xpose.msra.mxu0 0
        %2005 = vmatprep.subr.bf16.mxu0 0
        %2006 = vmatpush1.bf16.xpose.msra.mxu0 0
        %2007 = vmatprep.subr.bf16.mxu0 0
        %2008 = vmatpush1.bf16.xpose.msra.mxu0 0
        %2009 = vmatprep.subr.bf16.mxu0 0
        %2010 = vmatpush1.bf16.xpose.msra.mxu0 0
        %2011 = vmatprep.subr.bf16.mxu0 0
        %2012 = vmatpush1.bf16.xpose.msra.mxu0 0
        %2013 = vmatprep.subr.bf16.mxu0 0
        %2014 = vmatpush1.bf16.xpose.msra.mxu0 0
        %2015 = vmatprep.subr.bf16.mxu0 0
        %2016 = vmatpush1.bf16.xpose.msra.mxu0 0
        %2017 = vmatprep.subr.bf16.mxu0 0
        %2018 = vmatpush1.bf16.xpose.msra.mxu0 0
        %2019 = vmatprep.subr.bf16.mxu0 0
        %2020 = vmatpush1.bf16.xpose.msra.mxu0 0
        %2021 = vmatprep.subr.bf16.mxu0 0
        %2022 = vmatpush1.bf16.xpose.msra.mxu0 0
        %2023 = vmatprep.subr.bf16.mxu0 0
        %2024 = vmatpush1.bf16.xpose.msra.mxu0 0
        %2025 = vmatprep.subr.bf16.mxu0 0
        %2026 = vmatpush1.bf16.xpose.msra.mxu0 0
        %2027 = vmatprep.mubr.bf16.mxu0 0
        %2028 = vmatmul.mubr.bf16.gmra.mrb[0].mxu0 %v1990
        %v2029 = vpop.f32.mrb[0].mxu0
        %v2030 = vadd.f32 %v1983, %v2029
        %v2031 = vpop.f32.mrb[0].mxu0
        %v2032 = vpop.f32.mrb[0].mxu0
        %v2033 = vadd.f32 %v1984, %v2032
        %v2034 = vpop.f32.mrb[0].mxu0
        %2035 = vdwg.mxu0
        %2036 = vrot.lane.b32.xlu0 %v497, 104
        %v2037 = vpop.permute.xlu0 %2036
        %2038 = vrot.lane.b32.xlu0 %v497, 72
        %v2039 = vpop.permute.xlu0 %2038
        %v2041 = vsel %vm505, %v2037, 0
        %v2044 = vsel %vm505, %v2039, 0
        %2046 = vmatprep.subr.bf16.mxu0 0
        %2047 = vmatpush1.bf16.xpose.msra.mxu0 %v2044
        %2048 = vmatprep.subr.bf16.mxu0 0
        %2049 = vmatpush1.bf16.xpose.msra.mxu0 0
        %2050 = vmatprep.subr.bf16.mxu0 0
        %2051 = vmatpush1.bf16.xpose.msra.mxu0 0
        %2052 = vmatprep.subr.bf16.mxu0 0
        %2053 = vmatpush1.bf16.xpose.msra.mxu0 0
        %2054 = vmatprep.subr.bf16.mxu0 0
        %2055 = vmatpush1.bf16.xpose.msra.mxu0 0
        %2056 = vmatprep.subr.bf16.mxu0 0
        %2057 = vmatpush1.bf16.xpose.msra.mxu0 0
        %2058 = vmatprep.subr.bf16.mxu0 0
        %2059 = vmatpush1.bf16.xpose.msra.mxu0 0
        %2060 = vmatprep.subr.bf16.mxu0 0
        %2061 = vmatpush1.bf16.xpose.msra.mxu0 0
        %2062 = vmatprep.subr.bf16.mxu0 0
        %2063 = vmatpush1.bf16.xpose.msra.mxu0 0
        %2064 = vmatprep.subr.bf16.mxu0 0
        %2065 = vmatpush1.bf16.xpose.msra.mxu0 0
        %2066 = vmatprep.subr.bf16.mxu0 0
        %2067 = vmatpush1.bf16.xpose.msra.mxu0 0
        %2068 = vmatprep.subr.bf16.mxu0 0
        %2069 = vmatpush1.bf16.xpose.msra.mxu0 0
        %2070 = vmatprep.subr.bf16.mxu0 0
        %2071 = vmatpush1.bf16.xpose.msra.mxu0 0
        %2072 = vmatprep.subr.bf16.mxu0 0
        %2073 = vmatpush1.bf16.xpose.msra.mxu0 0
        %2074 = vmatprep.subr.bf16.mxu0 0
        %2075 = vmatpush1.bf16.xpose.msra.mxu0 0
        %2076 = vmatprep.subr.bf16.mxu0 0
        %2077 = vmatpush1.bf16.xpose.msra.mxu0 0
        %2078 = vmatprep.mubr.bf16.mxu0 0
        %2079 = vmatmul.mubr.bf16.gmra.mrb[0].mxu0 %v2041
        %v2080 = vpop.f32.mrb[0].mxu0
        %v2081 = vadd.f32 %v1983, %v2080
        %v2082 = vpop.f32.mrb[0].mxu0
        %v2083 = vpop.f32.mrb[0].mxu0
        %v2084 = vadd.f32 %v1984, %v2083
        %v2085 = vpop.f32.mrb[0].mxu0
        %2086 = vdwg.mxu0
        %2087 = vrot.lane.b32.xlu0 %v498, 104
        %v2088 = vpop.permute.xlu0 %2087
        %2089 = vrot.lane.b32.xlu0 %v498, 72
        %v2090 = vpop.permute.xlu0 %2089
        %v2092 = vsel %vm505, %v2088, 0
        %v2095 = vsel %vm505, %v2090, 0
        %2097 = vmatprep.subr.bf16.mxu0 0
        %2098 = vmatpush1.bf16.xpose.msra.mxu0 %v2095
        %2099 = vmatprep.subr.bf16.mxu0 0
        %2100 = vmatpush1.bf16.xpose.msra.mxu0 0
        %2101 = vmatprep.subr.bf16.mxu0 0
        %2102 = vmatpush1.bf16.xpose.msra.mxu0 0
        %2103 = vmatprep.subr.bf16.mxu0 0
        %2104 = vmatpush1.bf16.xpose.msra.mxu0 0
        %2105 = vmatprep.subr.bf16.mxu0 0
        %2106 = vmatpush1.bf16.xpose.msra.mxu0 0
        %2107 = vmatprep.subr.bf16.mxu0 0
        %2108 = vmatpush1.bf16.xpose.msra.mxu0 0
        %2109 = vmatprep.subr.bf16.mxu0 0
        %2110 = vmatpush1.bf16.xpose.msra.mxu0 0
        %2111 = vmatprep.subr.bf16.mxu0 0
        %2112 = vmatpush1.bf16.xpose.msra.mxu0 0
        %2113 = vmatprep.subr.bf16.mxu0 0
        %2114 = vmatpush1.bf16.xpose.msra.mxu0 0
        %2115 = vmatprep.subr.bf16.mxu0 0
        %2116 = vmatpush1.bf16.xpose.msra.mxu0 0
        %2117 = vmatprep.subr.bf16.mxu0 0
        %2118 = vmatpush1.bf16.xpose.msra.mxu0 0
        %2119 = vmatprep.subr.bf16.mxu0 0
        %2120 = vmatpush1.bf16.xpose.msra.mxu0 0
        %2121 = vmatprep.subr.bf16.mxu0 0
        %2122 = vmatpush1.bf16.xpose.msra.mxu0 0
        %2123 = vmatprep.subr.bf16.mxu0 0
        %2124 = vmatpush1.bf16.xpose.msra.mxu0 0
        %2125 = vmatprep.subr.bf16.mxu0 0
        %2126 = vmatpush1.bf16.xpose.msra.mxu0 0
        %2127 = vmatprep.subr.bf16.mxu0 0
        %2128 = vmatpush1.bf16.xpose.msra.mxu0 0
        %2129 = vmatprep.mubr.bf16.mxu0 0
        %2130 = vmatmul.mubr.bf16.gmra.mrb[0].mxu0 %v2092
        %v2131 = vpop.f32.mrb[0].mxu0
        %v2132 = vadd.f32 %v1983, %v2131
        %v2133 = vpop.f32.mrb[0].mxu0
        %v2134 = vpop.f32.mrb[0].mxu0
        %v2135 = vadd.f32 %v1984, %v2134
        %v2136 = vpop.f32.mrb[0].mxu0
        %2137 = vdwg.mxu0
        %2138 = vrot.lane.b32.xlu0 %v499, 104
        %v2139 = vpop.permute.xlu0 %2138
        %2140 = vrot.lane.b32.xlu0 %v499, 72
        %v2141 = vpop.permute.xlu0 %2140
        %v2143 = vsel %vm505, %v2139, 0
        %v2146 = vsel %vm505, %v2141, 0
        %2148 = vmatprep.subr.bf16.mxu0 0
        %2149 = vmatpush1.bf16.xpose.msra.mxu0 %v2146
        %2150 = vmatprep.subr.bf16.mxu0 0
        %2151 = vmatpush1.bf16.xpose.msra.mxu0 0
        %2152 = vmatprep.subr.bf16.mxu0 0
        %2153 = vmatpush1.bf16.xpose.msra.mxu0 0
        %2154 = vmatprep.subr.bf16.mxu0 0
        %2155 = vmatpush1.bf16.xpose.msra.mxu0 0
        %2156 = vmatprep.subr.bf16.mxu0 0
        %2157 = vmatpush1.bf16.xpose.msra.mxu0 0
        %2158 = vmatprep.subr.bf16.mxu0 0
        %2159 = vmatpush1.bf16.xpose.msra.mxu0 0
        %2160 = vmatprep.subr.bf16.mxu0 0
        %2161 = vmatpush1.bf16.xpose.msra.mxu0 0
        %2162 = vmatprep.subr.bf16.mxu0 0
        %2163 = vmatpush1.bf16.xpose.msra.mxu0 0
        %2164 = vmatprep.subr.bf16.mxu0 0
        %2165 = vmatpush1.bf16.xpose.msra.mxu0 0
        %2166 = vmatprep.subr.bf16.mxu0 0
        %2167 = vmatpush1.bf16.xpose.msra.mxu0 0
        %2168 = vmatprep.subr.bf16.mxu0 0
        %2169 = vmatpush1.bf16.xpose.msra.mxu0 0
        %2170 = vmatprep.subr.bf16.mxu0 0
        %2171 = vmatpush1.bf16.xpose.msra.mxu0 0
        %2172 = vmatprep.subr.bf16.mxu0 0
        %2173 = vmatpush1.bf16.xpose.msra.mxu0 0
        %2174 = vmatprep.subr.bf16.mxu0 0
        %2175 = vmatpush1.bf16.xpose.msra.mxu0 0
        %2176 = vmatprep.subr.bf16.mxu0 0
        %2177 = vmatpush1.bf16.xpose.msra.mxu0 0
        %2178 = vmatprep.subr.bf16.mxu0 0
        %2179 = vmatpush1.bf16.xpose.msra.mxu0 0
        %2180 = vmatprep.mubr.bf16.mxu0 0
        %2181 = vmatmul.mubr.bf16.gmra.mrb[0].mxu0 %v2143
        %v2182 = vpop.f32.mrb[0].mxu0
        %v2183 = vadd.f32 %v1983, %v2182
        %v2184 = vpop.f32.mrb[0].mxu0
        %v2185 = vpop.f32.mrb[0].mxu0
        %v2186 = vadd.f32 %v1984, %v2185
        %v2187 = vpop.f32.mrb[0].mxu0
        %2188 = vdwg.mxu0
        %v2189 = vadd.f32 %v2030, %v488
        %v2190 = vadd.f32 %v2033, %v489
        %v2191 = vadd.f32 %v2081, %v490
        %v2192 = vadd.f32 %v2084, %v491
        %v2193 = vadd.f32 %v2132, %v492
        %v2194 = vadd.f32 %v2135, %v493
        %v2195 = vadd.f32 %v2183, %v494
        %v2196 = vadd.f32 %v2186, %v495
        %v2197 = vsel %vm711, %v2189, -inf
        %2198 = vmax.xlane.f32.xlu0 %v2197
        %v2199 = vpop.xlane.xlu0 %2198
        %v2200 = vsel %vm711, %v2190, -inf
        %2201 = vmax.xlane.f32.xlu0 %v2200
        %v2202 = vpop.xlane.xlu0 %2201
        %v2203 = vsel %vm711, %v2191, -inf
        %2204 = vmax.xlane.f32.xlu0 %v2203
        %v2205 = vpop.xlane.xlu0 %2204
        %v2206 = vsel %vm711, %v2192, -inf
        %2207 = vmax.xlane.f32.xlu0 %v2206
        %v2208 = vpop.xlane.xlu0 %2207
        %v2209 = vsel %vm711, %v2193, -inf
        %2210 = vmax.xlane.f32.xlu0 %v2209
        %v2211 = vpop.xlane.xlu0 %2210
        %v2212 = vsel %vm711, %v2194, -inf
        %2213 = vmax.xlane.f32.xlu0 %v2212
        %v2214 = vpop.xlane.xlu0 %2213
        %v2215 = vsel %vm711, %v2195, -inf
        %2216 = vmax.xlane.f32.xlu0 %v2215
        %v2217 = vpop.xlane.xlu0 %2216
        %v2218 = vsel %vm711, %v2196, -inf
        %2219 = vmax.xlane.f32.xlu0 %v2218
        %v2220 = vpop.xlane.xlu0 %2219
        %v2221 = vsub.f32 %v2189, %v2199
        %v2222 = vsub.f32 %v2190, %v2202
        %v2223 = vsub.f32 %v2191, %v2205
        %v2224 = vsub.f32 %v2192, %v2208
        %v2225 = vsub.f32 %v2193, %v2211
        %v2226 = vsub.f32 %v2194, %v2214
        %v2227 = vsub.f32 %v2195, %v2217
        %v2228 = vsub.f32 %v2196, %v2220
        %v2229 = vmul.f32 %v2221, 1.442695
        %v2230 = vpow.pop %v2229
        %v2231 = vmul.f32 %v2222, 1.442695
        %v2232 = vpow.pop %v2231
        %v2233 = vmul.f32 %v2223, 1.442695
        %v2234 = vpow.pop %v2233
        %v2235 = vmul.f32 %v2224, 1.442695
        %v2236 = vpow.pop %v2235
        %v2237 = vmul.f32 %v2225, 1.442695
        %v2238 = vpow.pop %v2237
        %v2239 = vmul.f32 %v2226, 1.442695
        %v2240 = vpow.pop %v2239
        %v2241 = vmul.f32 %v2227, 1.442695
        %v2242 = vpow.pop %v2241
        %v2243 = vmul.f32 %v2228, 1.442695
        %v2244 = vpow.pop %v2243
        %v2245 = vsel %vm711, %v2230, 0.0
        %2246 = vadd.xlane.f32.xlu0 %v2245
        %v2247 = vpop.xlane.xlu0 %2246
        %v2248 = vsel %vm711, %v2232, 0.0
        %2249 = vadd.xlane.f32.xlu0 %v2248
        %v2250 = vpop.xlane.xlu0 %2249
        %v2251 = vsel %vm711, %v2234, 0.0
        %2252 = vadd.xlane.f32.xlu0 %v2251
        %v2253 = vpop.xlane.xlu0 %2252
        %v2254 = vsel %vm711, %v2236, 0.0
        %2255 = vadd.xlane.f32.xlu0 %v2254
        %v2256 = vpop.xlane.xlu0 %2255
        %v2257 = vsel %vm711, %v2238, 0.0
        %2258 = vadd.xlane.f32.xlu0 %v2257
        %v2259 = vpop.xlane.xlu0 %2258
        %v2260 = vsel %vm711, %v2240, 0.0
        %2261 = vadd.xlane.f32.xlu0 %v2260
        %v2262 = vpop.xlane.xlu0 %2261
        %v2263 = vsel %vm711, %v2242, 0.0
        %2264 = vadd.xlane.f32.xlu0 %v2263
        %v2265 = vpop.xlane.xlu0 %2264
        %v2266 = vsel %vm711, %v2244, 0.0
        %2267 = vadd.xlane.f32.xlu0 %v2266
        %v2268 = vpop.xlane.xlu0 %2267
        %v2269 = vrcp.pop %v2247
        %v2270 = vrcp.pop %v2250
        %v2271 = vrcp.pop %v2253
        %v2272 = vrcp.pop %v2256
        %v2273 = vrcp.pop %v2259
        %v2274 = vrcp.pop %v2262
        %v2275 = vrcp.pop %v2265
        %v2276 = vrcp.pop %v2268
        %v2277 = vmul.f32 %v2230, %v2269
        %v2278 = vmul.f32 %v2232, %v2270
        %v2279 = vmul.f32 %v2234, %v2271
        %v2280 = vmul.f32 %v2236, %v2272
        %v2281 = vmul.f32 %v2238, %v2273
        %v2282 = vmul.f32 %v2240, %v2274
        %v2283 = vmul.f32 %v2242, %v2275
        %v2284 = vmul.f32 %v2244, %v2276
        %v2285 = vpack.c.bf16 %v2278, %v2277
        %v2286 = vpack.c.bf16 %v2280, %v2279
        %v2287 = vpack.c.bf16 %v2282, %v2281
        %v2288 = vpack.c.bf16 %v2284, %v2283
        %2289 = vrot.lane.b32.xlu0 %v496, 40
        %v2290 = vpop.permute.xlu0 %2289
        %v2293 = vsel %vm711, %v2285, 0
        %2295 = vmatprep.subr.bf16.mxu0 0
        %2296 = vmatpush1.bf16.msra.mxu0 %v2290
        %2297 = vmatprep.subr.bf16.mxu0 0
        %2298 = vmatpush1.bf16.msra.mxu0 0
        %2299 = vmatprep.subr.bf16.mxu0 0
        %2300 = vmatpush1.bf16.msra.mxu0 0
        %2301 = vmatprep.subr.bf16.mxu0 0
        %2302 = vmatpush1.bf16.msra.mxu0 0
        %2303 = vmatprep.subr.bf16.mxu0 0
        %2304 = vmatpush1.bf16.msra.mxu0 0
        %2305 = vmatprep.subr.bf16.mxu0 0
        %2306 = vmatpush1.bf16.msra.mxu0 0
        %2307 = vmatprep.subr.bf16.mxu0 0
        %2308 = vmatpush1.bf16.msra.mxu0 0
        %2309 = vmatprep.subr.bf16.mxu0 0
        %2310 = vmatpush1.bf16.msra.mxu0 0
        %2311 = vmatprep.subr.bf16.mxu0 0
        %2312 = vmatpush1.bf16.msra.mxu0 0
        %2313 = vmatprep.subr.bf16.mxu0 0
        %2314 = vmatpush1.bf16.msra.mxu0 0
        %2315 = vmatprep.subr.bf16.mxu0 0
        %2316 = vmatpush1.bf16.msra.mxu0 0
        %2317 = vmatprep.subr.bf16.mxu0 0
        %2318 = vmatpush1.bf16.msra.mxu0 0
        %2319 = vmatprep.subr.bf16.mxu0 0
        %2320 = vmatpush1.bf16.msra.mxu0 0
        %2321 = vmatprep.subr.bf16.mxu0 0
        %2322 = vmatpush1.bf16.msra.mxu0 0
        %2323 = vmatprep.subr.bf16.mxu0 0
        %2324 = vmatpush1.bf16.msra.mxu0 0
        %2325 = vmatprep.subr.bf16.mxu0 0
        %2326 = vmatpush1.bf16.msra.mxu0 0
        %2327 = vmatprep.mubr.bf16.mxu0 0
        %2328 = vmatmul.mubr.bf16.gmra.mrb[0].mxu0 %v2293
        %v2329 = vpop.f32.mrb[0].mxu0
        %v2330 = vadd.f32 0.0, %v2329
        %v2331 = vpop.f32.mrb[0].mxu0
        %v2332 = vpop.f32.mrb[0].mxu0
        %v2333 = vadd.f32 0.0, %v2332
        %v2334 = vpop.f32.mrb[0].mxu0
        %2335 = vdwg.mxu0
        %2336 = vrot.lane.b32.xlu0 %v497, 40
        %v2337 = vpop.permute.xlu0 %2336
        %v2340 = vsel %vm711, %v2286, 0
        %2342 = vmatprep.subr.bf16.mxu0 0
        %2343 = vmatpush1.bf16.msra.mxu0 %v2337
        %2344 = vmatprep.subr.bf16.mxu0 0
        %2345 = vmatpush1.bf16.msra.mxu0 0
        %2346 = vmatprep.subr.bf16.mxu0 0
        %2347 = vmatpush1.bf16.msra.mxu0 0
        %2348 = vmatprep.subr.bf16.mxu0 0
        %2349 = vmatpush1.bf16.msra.mxu0 0
        %2350 = vmatprep.subr.bf16.mxu0 0
        %2351 = vmatpush1.bf16.msra.mxu0 0
        %2352 = vmatprep.subr.bf16.mxu0 0
        %2353 = vmatpush1.bf16.msra.mxu0 0
        %2354 = vmatprep.subr.bf16.mxu0 0
        %2355 = vmatpush1.bf16.msra.mxu0 0
        %2356 = vmatprep.subr.bf16.mxu0 0
        %2357 = vmatpush1.bf16.msra.mxu0 0
        %2358 = vmatprep.subr.bf16.mxu0 0
        %2359 = vmatpush1.bf16.msra.mxu0 0
        %2360 = vmatprep.subr.bf16.mxu0 0
        %2361 = vmatpush1.bf16.msra.mxu0 0
        %2362 = vmatprep.subr.bf16.mxu0 0
        %2363 = vmatpush1.bf16.msra.mxu0 0
        %2364 = vmatprep.subr.bf16.mxu0 0
        %2365 = vmatpush1.bf16.msra.mxu0 0
        %2366 = vmatprep.subr.bf16.mxu0 0
        %2367 = vmatpush1.bf16.msra.mxu0 0
        %2368 = vmatprep.subr.bf16.mxu0 0
        %2369 = vmatpush1.bf16.msra.mxu0 0
        %2370 = vmatprep.subr.bf16.mxu0 0
        %2371 = vmatpush1.bf16.msra.mxu0 0
        %2372 = vmatprep.subr.bf16.mxu0 0
        %2373 = vmatpush1.bf16.msra.mxu0 0
        %2374 = vmatprep.mubr.bf16.mxu0 0
        %2375 = vmatmul.mubr.bf16.gmra.mrb[0].mxu0 %v2340
        %v2376 = vpop.f32.mrb[0].mxu0
        %v2377 = vadd.f32 0.0, %v2376
        %v2378 = vpop.f32.mrb[0].mxu0
        %v2379 = vpop.f32.mrb[0].mxu0
        %v2380 = vadd.f32 0.0, %v2379
        %v2381 = vpop.f32.mrb[0].mxu0
        %2382 = vdwg.mxu0
        %2383 = vrot.lane.b32.xlu0 %v498, 40
        %v2384 = vpop.permute.xlu0 %2383
        %v2387 = vsel %vm711, %v2287, 0
        %2389 = vmatprep.subr.bf16.mxu0 0
        %2390 = vmatpush1.bf16.msra.mxu0 %v2384
        %2391 = vmatprep.subr.bf16.mxu0 0
        %2392 = vmatpush1.bf16.msra.mxu0 0
        %2393 = vmatprep.subr.bf16.mxu0 0
        %2394 = vmatpush1.bf16.msra.mxu0 0
        %2395 = vmatprep.subr.bf16.mxu0 0
        %2396 = vmatpush1.bf16.msra.mxu0 0
        %2397 = vmatprep.subr.bf16.mxu0 0
        %2398 = vmatpush1.bf16.msra.mxu0 0
        %2399 = vmatprep.subr.bf16.mxu0 0
        %2400 = vmatpush1.bf16.msra.mxu0 0
        %2401 = vmatprep.subr.bf16.mxu0 0
        %2402 = vmatpush1.bf16.msra.mxu0 0
        %2403 = vmatprep.subr.bf16.mxu0 0
        %2404 = vmatpush1.bf16.msra.mxu0 0
        %2405 = vmatprep.subr.bf16.mxu0 0
        %2406 = vmatpush1.bf16.msra.mxu0 0
        %2407 = vmatprep.subr.bf16.mxu0 0
        %2408 = vmatpush1.bf16.msra.mxu0 0
        %2409 = vmatprep.subr.bf16.mxu0 0
        %2410 = vmatpush1.bf16.msra.mxu0 0
        %2411 = vmatprep.subr.bf16.mxu0 0
        %2412 = vmatpush1.bf16.msra.mxu0 0
        %2413 = vmatprep.subr.bf16.mxu0 0
        %2414 = vmatpush1.bf16.msra.mxu0 0
        %2415 = vmatprep.subr.bf16.mxu0 0
        %2416 = vmatpush1.bf16.msra.mxu0 0
        %2417 = vmatprep.subr.bf16.mxu0 0
        %2418 = vmatpush1.bf16.msra.mxu0 0
        %2419 = vmatprep.subr.bf16.mxu0 0
        %2420 = vmatpush1.bf16.msra.mxu0 0
        %2421 = vmatprep.mubr.bf16.mxu0 0
        %2422 = vmatmul.mubr.bf16.gmra.mrb[0].mxu0 %v2387
        %v2423 = vpop.f32.mrb[0].mxu0
        %v2424 = vadd.f32 0.0, %v2423
        %v2425 = vpop.f32.mrb[0].mxu0
        %v2426 = vpop.f32.mrb[0].mxu0
        %v2427 = vadd.f32 0.0, %v2426
        %v2428 = vpop.f32.mrb[0].mxu0
        %2429 = vdwg.mxu0
        %2430 = vrot.lane.b32.xlu0 %v499, 40
        %v2431 = vpop.permute.xlu0 %2430
        %v2434 = vsel %vm711, %v2288, 0
        %2436 = vmatprep.subr.bf16.mxu0 0
        %2437 = vmatpush1.bf16.msra.mxu0 %v2431
        %2438 = vmatprep.subr.bf16.mxu0 0
        %2439 = vmatpush1.bf16.msra.mxu0 0
        %2440 = vmatprep.subr.bf16.mxu0 0
        %2441 = vmatpush1.bf16.msra.mxu0 0
        %2442 = vmatprep.subr.bf16.mxu0 0
        %2443 = vmatpush1.bf16.msra.mxu0 0
        %2444 = vmatprep.subr.bf16.mxu0 0
        %2445 = vmatpush1.bf16.msra.mxu0 0
        %2446 = vmatprep.subr.bf16.mxu0 0
        %2447 = vmatpush1.bf16.msra.mxu0 0
        %2448 = vmatprep.subr.bf16.mxu0 0
        %2449 = vmatpush1.bf16.msra.mxu0 0
        %2450 = vmatprep.subr.bf16.mxu0 0
        %2451 = vmatpush1.bf16.msra.mxu0 0
        %2452 = vmatprep.subr.bf16.mxu0 0
        %2453 = vmatpush1.bf16.msra.mxu0 0
        %2454 = vmatprep.subr.bf16.mxu0 0
        %2455 = vmatpush1.bf16.msra.mxu0 0
        %2456 = vmatprep.subr.bf16.mxu0 0
        %2457 = vmatpush1.bf16.msra.mxu0 0
        %2458 = vmatprep.subr.bf16.mxu0 0
        %2459 = vmatpush1.bf16.msra.mxu0 0
        %2460 = vmatprep.subr.bf16.mxu0 0
        %2461 = vmatpush1.bf16.msra.mxu0 0
        %2462 = vmatprep.subr.bf16.mxu0 0
        %2463 = vmatpush1.bf16.msra.mxu0 0
        %2464 = vmatprep.subr.bf16.mxu0 0
        %2465 = vmatpush1.bf16.msra.mxu0 0
        %2466 = vmatprep.subr.bf16.mxu0 0
        %2467 = vmatpush1.bf16.msra.mxu0 0
        %2468 = vmatprep.mubr.bf16.mxu0 0
        %2469 = vmatmul.mubr.bf16.gmra.mrb[0].mxu0 %v2434
        %v2470 = vpop.f32.mrb[0].mxu0
        %v2471 = vadd.f32 0.0, %v2470
        %v2472 = vpop.f32.mrb[0].mxu0
        %v2473 = vpop.f32.mrb[0].mxu0
        %v2474 = vadd.f32 0.0, %v2473
        %v2475 = vpop.f32.mrb[0].mxu0
        %2476 = vdwg.mxu0
        %2485 = vrot.lane.b32.xlu0 %v1340, 8
        %v2486 = vpop.permute.xlu0 %2485
        %2487 = vrot.lane.b32.xlu0 %v1343, 8
        %v2488 = vpop.permute.xlu0 %2487
        %2489 = vrot.lane.b32.xlu0 %v1387, 8
        %v2490 = vpop.permute.xlu0 %2489
        %2491 = vrot.lane.b32.xlu0 %v1390, 8
        %v2492 = vpop.permute.xlu0 %2491
        %2493 = vrot.lane.b32.xlu0 %v1434, 8
        %v2494 = vpop.permute.xlu0 %2493
        %2495 = vrot.lane.b32.xlu0 %v1437, 8
        %v2496 = vpop.permute.xlu0 %2495
        %2497 = vrot.lane.b32.xlu0 %v1481, 8
        %v2498 = vpop.permute.xlu0 %2497
        %2499 = vrot.lane.b32.xlu0 %v1484, 8
        %v2500 = vpop.permute.xlu0 %2499
        %2517 = vrot.lane.b32.xlu0 %v1835, 16
        %v2518 = vpop.permute.xlu0 %2517
        %2519 = vrot.lane.b32.xlu0 %v1838, 16
        %v2520 = vpop.permute.xlu0 %2519
        %2521 = vrot.lane.b32.xlu0 %v1882, 16
        %v2522 = vpop.permute.xlu0 %2521
        %2523 = vrot.lane.b32.xlu0 %v1885, 16
        %v2524 = vpop.permute.xlu0 %2523
        %2525 = vrot.lane.b32.xlu0 %v1929, 16
        %v2526 = vpop.permute.xlu0 %2525
        %2527 = vrot.lane.b32.xlu0 %v1932, 16
        %v2528 = vpop.permute.xlu0 %2527
        %2529 = vrot.lane.b32.xlu0 %v1976, 16
        %v2530 = vpop.permute.xlu0 %2529
        %2531 = vrot.lane.b32.xlu0 %v1979, 16
        %v2532 = vpop.permute.xlu0 %2531
        %2549 = vrot.lane.b32.xlu0 %v2330, 24
        %v2550 = vpop.permute.xlu0 %2549
        %2551 = vrot.lane.b32.xlu0 %v2333, 24
        %v2552 = vpop.permute.xlu0 %2551
        %2553 = vrot.lane.b32.xlu0 %v2377, 24
        %v2554 = vpop.permute.xlu0 %2553
        %2555 = vrot.lane.b32.xlu0 %v2380, 24
        %v2556 = vpop.permute.xlu0 %2555
        %2557 = vrot.lane.b32.xlu0 %v2424, 24
        %v2558 = vpop.permute.xlu0 %2557
        %2559 = vrot.lane.b32.xlu0 %v2427, 24
        %v2560 = vpop.permute.xlu0 %2559
        %2561 = vrot.lane.b32.xlu0 %v2471, 24
        %v2562 = vpop.permute.xlu0 %2561
        %2563 = vrot.lane.b32.xlu0 %v2474, 24
        %v2564 = vpop.permute.xlu0 %2563
        %v2573 = vsel %vm505, %v845, %v2486
        %v2574 = vsel %vm505, %v848, %v2488
        %v2575 = vsel %vm505, %v892, %v2490
        %v2576 = vsel %vm505, %v895, %v2492
        %v2577 = vsel %vm505, %v939, %v2494
        %v2578 = vsel %vm505, %v942, %v2496
        %v2579 = vsel %vm505, %v986, %v2498
        %v2580 = vsel %vm505, %v989, %v2500
        %v2581 = vsel %vm711, %v2573, %v2518
        %v2582 = vsel %vm711, %v2574, %v2520
        %v2583 = vsel %vm711, %v2575, %v2522
        %v2584 = vsel %vm711, %v2576, %v2524
        %v2585 = vsel %vm711, %v2577, %v2526
        %v2586 = vsel %vm711, %v2578, %v2528
        %v2587 = vsel %vm711, %v2579, %v2530
        %v2588 = vsel %vm711, %v2580, %v2532
        %vm2589 = vcmask 195584
        %v2590 = vsel %vm2589, %v2581, %v2550
        %v2591 = vsel %vm2589, %v2582, %v2552
        %v2592 = vsel %vm2589, %v2583, %v2554
        %v2593 = vsel %vm2589, %v2584, %v2556
        %v2594 = vsel %vm2589, %v2585, %v2558
        %v2595 = vsel %vm2589, %v2586, %v2560
        %v2596 = vsel %vm2589, %v2587, %v2562
        %v2597 = vsel %vm2589, %v2588, %v2564
        %v2598 = vpack.c.bf16 %v2591, %v2590
        %v2599 = vpack.c.bf16 %v2593, %v2592
        %v2600 = vpack.c.bf16 %v2595, %v2594
        %v2601 = vpack.c.bf16 %v2597, %v2596
        %v2602 = vld [vmem:[#allocation7] sm:$0xf]
        %v2603 = vld [vmem:[#allocation7 + $0x4] sm:$0xf]
        %v2604 = vld [vmem:[#allocation7 + $0x8] sm:$0xf]
        %v2605 = vld [vmem:[#allocation7 + $0xc] sm:$0xf]
        %v2606 = vld [vmem:[%s4] sm:$0x1]
        %v2608 = vlaneseq
        %v2609 = vshrl.u32 %v2608, 7
        %v2610 = vsub.s32 0, %v2609
        %v2611 = vrot.slane %v2606, %v2610
        %v2617 = vunpack.c.l.b16 %v2602
        %v2618 = vunpack.c.l.b16 %v2603
        %v2619 = vunpack.c.l.b16 %v2604
        %v2620 = vunpack.c.l.b16 %v2605
        %v2621 = vpack.c.b16 %v2618, %v2617
        %v2622 = vpack.c.b16 %v2620, %v2619
        %v2626 = vsel %vm410, %v2598, 0
        %v2629 = vsel %vm410, %v2599, 0
        %v2632 = vsel %vm410, %v2600, 0
        %v2635 = vsel %vm410, %v2601, 0
        %2637 = vmatprep.subr.bf16.mxu0 0
        %2638 = vmatpush1.bf16.msra.mxu0 %v2621
        %2639 = vmatprep.subr.bf16.mxu0 0
        %2640 = vmatpush1.bf16.msra.mxu0 %v2622
        %2641 = vmatprep.subr.bf16.mxu0 0
        %2642 = vmatpush1.bf16.msra.mxu0 0
        %2643 = vmatprep.subr.bf16.mxu0 0
        %2644 = vmatpush1.bf16.msra.mxu0 0
        %2645 = vmatprep.subr.bf16.mxu0 0
        %2646 = vmatpush1.bf16.msra.mxu0 0
        %2647 = vmatprep.subr.bf16.mxu0 0
        %2648 = vmatpush1.bf16.msra.mxu0 0
        %2649 = vmatprep.subr.bf16.mxu0 0
        %2650 = vmatpush1.bf16.msra.mxu0 0
        %2651 = vmatprep.subr.bf16.mxu0 0
        %2652 = vmatpush1.bf16.msra.mxu0 0
        %2653 = vmatprep.subr.bf16.mxu0 0
        %2654 = vmatpush1.bf16.msra.mxu0 0
        %2655 = vmatprep.subr.bf16.mxu0 0
        %2656 = vmatpush1.bf16.msra.mxu0 0
        %2657 = vmatprep.subr.bf16.mxu0 0
        %2658 = vmatpush1.bf16.msra.mxu0 0
        %2659 = vmatprep.subr.bf16.mxu0 0
        %2660 = vmatpush1.bf16.msra.mxu0 0
        %2661 = vmatprep.subr.bf16.mxu0 0
        %2662 = vmatpush1.bf16.msra.mxu0 0
        %2663 = vmatprep.subr.bf16.mxu0 0
        %2664 = vmatpush1.bf16.msra.mxu0 0
        %2665 = vmatprep.subr.bf16.mxu0 0
        %2666 = vmatpush1.bf16.msra.mxu0 0
        %2667 = vmatprep.subr.bf16.mxu0 0
        %2668 = vmatpush1.bf16.msra.mxu0 0
        %2669 = vmatprep.mubr.bf16.mxu0 0
        %2670 = vmatmul.mubr.bf16.gmra.mrb[0].mxu0 %v2626
        %v2671 = vpop.f32.mrb[0].mxu0
        %v2672 = vadd.f32 %v2611, %v2671
        %v2673 = vpop.f32.mrb[0].mxu0
        %v2674 = vpop.f32.mrb[0].mxu0
        %v2675 = vadd.f32 %v2611, %v2674
        %v2676 = vpop.f32.mrb[0].mxu0
        %2677 = vmatprep.mubr.bf16.mxu0 0
        %2678 = vmatmul.mubr.bf16.gmra.mrb[0].mxu0 %v2629
        %v2679 = vpop.f32.mrb[0].mxu0
        %v2680 = vadd.f32 %v2611, %v2679
        %v2681 = vpop.f32.mrb[0].mxu0
        %v2682 = vpop.f32.mrb[0].mxu0
        %v2683 = vadd.f32 %v2611, %v2682
        %v2684 = vpop.f32.mrb[0].mxu0
        %2685 = vmatprep.mubr.bf16.mxu0 0
        %2686 = vmatmul.mubr.bf16.gmra.mrb[0].mxu0 %v2632
        %v2687 = vpop.f32.mrb[0].mxu0
        %v2688 = vadd.f32 %v2611, %v2687
        %v2689 = vpop.f32.mrb[0].mxu0
        %v2690 = vpop.f32.mrb[0].mxu0
        %v2691 = vadd.f32 %v2611, %v2690
        %v2692 = vpop.f32.mrb[0].mxu0
        %2693 = vmatprep.mubr.bf16.mxu0 0
        %2694 = vmatmul.mubr.bf16.gmra.mrb[0].mxu0 %v2635
        %v2695 = vpop.f32.mrb[0].mxu0
        %v2696 = vadd.f32 %v2611, %v2695
        %v2697 = vpop.f32.mrb[0].mxu0
        %v2698 = vpop.f32.mrb[0].mxu0
        %v2699 = vadd.f32 %v2611, %v2698
        %v2700 = vpop.f32.mrb[0].mxu0
        %2701 = vdwg.mxu0
        %2702 = vst.msk [vmem:[%s355] sm:$0xff] %vm410, %v2672
        %2703 = vst.msk [vmem:[%s355 + $0x8] sm:$0xff] %vm410, %v2675
        %2704 = vst.msk [vmem:[%s355 + $0x10] sm:$0xff] %vm410, %v2680
        %2705 = vst.msk [vmem:[%s355 + $0x18] sm:$0xff] %vm410, %v2683
        %2706 = vst.msk [vmem:[%s355 + $0x20] sm:$0xff] %vm410, %v2688
        %2707 = vst.msk [vmem:[%s355 + $0x28] sm:$0xff] %vm410, %v2691
        %2708 = vst.msk [vmem:[%s355 + $0x30] sm:$0xff] %vm410, %v2696
        %2709 = vst.msk [vmem:[%s355 + $0x38] sm:$0xff] %vm410, %v2699
        %s2710 = sand.u32 %s186, 1
        %s2711 = scalar_lea.sflag [#allocation4], %s2710
        %s2712 = sand.u32 %s186, 1
        %s2713 = smul.addr %s2712, 64
        %s2714 = scalar_lea.vmem [#allocation11], %s2713
        // Predicated region
        $region69: #{tpu_custom_call.1} parent=47 // pred_check
          %p2715 = pneg %p196
        $region70: #{tpu_custom_call.1} parent=47 // pred_check_branch
          %2717 = sbr.rel (%p2715) target = $region72
        $region71: #{tpu_custom_call.1} parent=47 // pred_region
          %s2718 = smul.u32 4, %s26
          %s2720 = ssub.s32 1024, 1024
          %2721 = vsyncadd %s2711, %s2720
          %s2722 = smul.addr %s2718, 2
          %s2723 = smul.addr %s2722, 128
          %s2724 = scalar_lea.hbm %s7, %s2723
          %s2725 = sshll.u32 %s2714, 4
          %s2726 = int_to_ptr.vmem [resolvable:$true] %s2725
          %2731 = dma.vmem_to_hbm [thread:$0]  %s2726, 1024, %s2724, %s2711, 128, 128, 8
        $region72: #{tpu_custom_call.1} parent=47 // pred_fallthru
          _
      $region48: #{tpu_custom_call.1} parent=5 // pred_fallthru
        _
      %p2732 = scmp.le.s32.totalorder 2, %s21
      // Predicated region
      $region73: #{tpu_custom_call.1} parent=5 // pred_check
        %p2733 = pneg %p2732
      $region74: #{tpu_custom_call.1} parent=5 // pred_check_branch
        %2735 = sbr.rel (%p2733) target = $region76
      $region75: #{tpu_custom_call.1} parent=5 // pred_region
        %s2736 = ssub.s32 %s21, 2
        // Predicated region
        $region77: #{tpu_custom_call.1} parent=75 // pred_check
          %p2737 = pneg %p202
        $region78: #{tpu_custom_call.1} parent=75 // pred_check_branch
          %2739 = sbr.rel (%p2737) target = $region80
        $region79: #{tpu_custom_call.1} parent=75 // pred_region
          %s2740 = sand.u32 %s187, 1
          %s2741 = scalar_lea.sflag [#allocation4], %s2740
          %s2742 = sand.u32 %s187, 1
          %s2743 = smul.addr %s2742, 64
          %s2744 = scalar_lea.vmem [#allocation11], %s2743
          %2745 = dma.done %s2741, 1024
        $region80: #{tpu_custom_call.1} parent=75 // pred_fallthru
          _
      $region76: #{tpu_custom_call.1} parent=5 // pred_fallthru
        _
    $region6: #{tpu_custom_call.1} parent=1 // loop_footer
      %s25 = sadd.s32 1, %s21
    $region7: #{tpu_custom_call.1} parent=1 // loop_footer_branch
      %20 = sbr.rel target = $region3
    $region8: #{tpu_custom_call.1} parent=1 // loop_exit
      _
    %2746 = vsyncpa [#allocation3], 1
    %s2747 = scalar_lea.sflag [#allocation3], 1
    %2748 = vsyncpa %s2747, 1
    %2749 = vsyncpa [#allocation6], 1
    %2750 = vsyncpa [#allocation9], 1
    %2751 = vsyncpa [#allocation4], 1
    %s2752 = scalar_lea.sflag [#allocation4], 1
    %2753 = vsyncpa %s2752, 1

</llo_original>
